<compile_context>
chip_gen: v6e
topology: v6e:2x2x1
jax: 0.10.0
libtpu: 0.0.40
codegen_flags: <defaults>
</compile_context>

<pallas_src>
import functools

import jax
import jax.numpy as jnp
from jax import lax
from jax.experimental import pallas as pl
from jax.experimental.pallas import tpu as pltpu


def _round_up(x, m):
    return ((x + m - 1) // m) * m


# ---------------------------------------------------------------------------
# Fused kernel: conv3x3+LReLU -> conv3x3+LReLU -> 2x2 window max, one batch/step
# ---------------------------------------------------------------------------
def _double_conv_kernel(x_ref, w1_ref, b1_ref, w2_ref, b2_ref, edge_ref,
                        o_ref, buf_ref, *, H, W, cin_p, cout_p, PAD):
    """Ref shapes (channel counts padded to a multiple of 8):

    x_ref   : (1, cin_p, H*W)      f32   input, spatial flattened on lanes
    w1_ref  : (9, cout_p, cin_p)   bf16  conv1 taps, t = (dy+1)*3 + (dx+1)
    b1_ref  : (cout_p, 1)          f32
    w2_ref  : (9, cout_p, cout_p)  bf16
    b2_ref  : (cout_p, 1)          f32
    edge_ref: (2, H*W)             f32   row0: col>0, row1: col<W-1
    o_ref   : (1, cout_p, H*W)     f32   2x2-window max at every position
    buf_ref : (Cmax_p, PAD+H*W+PAD) f32  persistent zero-halo scratch
    """
    HW = H * W
    mask_l = edge_ref[0:1, :]          # left neighbour exists  (col > 0)
    mask_r = edge_ref[1:2, :]          # right neighbour exists (col < W-1)

    # Re-zero the halo pads every step: two aligned (Cmax, PAD) stores, cheap,
    # and megacore-safe (no reliance on this core having run grid step 0).
    cmax = buf_ref.shape[0]
    buf_ref[:, :PAD] = jnp.zeros((cmax, PAD), jnp.float32)
    buf_ref[:, PAD + HW:] = jnp.zeros((cmax, PAD), jnp.float32)

    def conv3x3_lrelu(c_in, w_ref, b_ref):
        # Input activation sits in buf_ref[:c_in, PAD:PAD+HW].  9 accumulating
        # K=c_in dots, each reading a shifted slice of the zero-halo scratch;
        # vertical out-of-image reads hit the zero pads, horizontal wrap is
        # killed by the two hoisted edge masks.
        acc = jnp.zeros((cout_p, HW), jnp.float32)
        t = 0
        for dy in (-1, 0, 1):
            for dx in (-1, 0, 1):
                s = PAD + dy * W + dx
                v = buf_ref[:c_in, s:s + HW]
                if dx == -1:
                    v = v * mask_l
                elif dx == 1:
                    v = v * mask_r
                acc = acc + jnp.dot(w_ref[t], v.astype(jnp.bfloat16),
                                    preferred_element_type=jnp.float32)
                t += 1
        acc = acc + b_ref[...]                    # (cout_p, 1) lane-broadcast
        return jnp.maximum(acc, 0.2 * acc)        # LeakyReLU(0.2)

    # conv1: stage the input image into the halo scratch (aligned store).
    buf_ref[:cin_p, PAD:PAD + HW] = x_ref[0]
    h = conv3x3_lrelu(cin_p, w1_ref, b1_ref)

    # conv2: reuse the same scratch for the intermediate activation.
    buf_ref[:cout_p, PAD:PAD + HW] = h
    h = conv3x3_lrelu(cout_p, w2_ref, b2_ref)

    # Fused 2x2 window max: shifts +1, +W, +W+1 read the zero right pad at the
    # image end; the wrapper picks the even-row/even-col anchors.
    buf_ref[:cout_p, PAD:PAD + HW] = h
    m = jnp.maximum(
        jnp.maximum(h, buf_ref[:cout_p, PAD + 1:PAD + 1 + HW]),
        jnp.maximum(buf_ref[:cout_p, PAD + W:PAD + W + HW],
                    buf_ref[:cout_p, PAD + W + 1:PAD + W + 1 + HW]))
    o_ref[0] = m.astype(o_ref.dtype)


# ---------------------------------------------------------------------------
# Wrapper
# ---------------------------------------------------------------------------
def _weight_taps(w_oihw, ci_p, co_p):
    """(Cout, Cin, 3, 3) OIHW -> (9, co_p, ci_p) bf16, tap index t = ky*3 + kx."""
    co, ci = w_oihw.shape[0], w_oihw.shape[1]
    w = jnp.pad(w_oihw.astype(jnp.float32),
                ((0, co_p - co), (0, ci_p - ci), (0, 0), (0, 0)))
    w = jnp.transpose(w, (2, 3, 0, 1)).reshape(9, co_p, ci_p)
    return w.astype(jnp.bfloat16)


@jax.jit
def double_conv_forward(x_nchw, w1, b1, w2, b2):
    """x: (N, Cin, H, W); w*: (Cout, *, 3, 3) OIHW; b*: (Cout,)."""
    N, Cin, H, W = x_nchw.shape
    Cout = w1.shape[0]
    assert H % 2 == 0 and W % 2 == 0, "MaxPool2x2 path assumes even H, W"
    HW = H * W
    cin_p = _round_up(Cin, 8)          # sublane alignment (channel-only pad)
    cout_p = _round_up(Cout, 8)
    cmax_p = max(cin_p, cout_p)
    PAD = _round_up(W + 1, 128)        # aligned zero halo, >= max |tap shift|

    # NCHW -> (N, C, H*W): pure reshape (no transpose), spatial on lanes.
    x2d = x_nchw.reshape(N, Cin, HW).astype(jnp.float32)
    if cin_p != Cin:
        x2d = jnp.pad(x2d, ((0, 0), (0, cin_p - Cin), (0, 0)))

    w1t = _weight_taps(w1, cin_p, cout_p)
    w2t = _weight_taps(w2, cout_p, cout_p)
    b1p = jnp.pad(b1.astype(jnp.float32), (0, cout_p - Cout)).reshape(cout_p, 1)
    b2p = jnp.pad(b2.astype(jnp.float32), (0, cout_p - Cout)).reshape(cout_p, 1)

    # Hoisted horizontal-wrap masks (the only masking the halo scheme needs).
    col = jnp.arange(HW, dtype=jnp.int32) % W
    edge = jnp.stack([col > 0, col < W - 1]).astype(jnp.float32)   # (2, HW)

    kernel = functools.partial(_double_conv_kernel, H=H, W=W,
                               cin_p=cin_p, cout_p=cout_p, PAD=PAD)

    flops = N * 2 * HW * 9 * (cout_p * cin_p + cout_p * cout_p)
    bytes_accessed = (4 * (x2d.size + b1p.size + b2p.size + edge.size
                           + N * cout_p * HW) + 2 * (w1t.size + w2t.size))

    full = pl.pallas_call(
        kernel,
        out_shape=jax.ShapeDtypeStruct((N, cout_p, HW), jnp.float32),
        grid_spec=pltpu.PrefetchScalarGridSpec(
            num_scalar_prefetch=0,
            grid=(N,),
            in_specs=[
                pl.BlockSpec((1, cin_p, HW), lambda n: (n, 0, 0)),        # x
                pl.BlockSpec((9, cout_p, cin_p), lambda n: (0, 0, 0)),    # w1
                pl.BlockSpec((cout_p, 1), lambda n: (0, 0)),              # b1
                pl.BlockSpec((9, cout_p, cout_p), lambda n: (0, 0, 0)),   # w2
                pl.BlockSpec((cout_p, 1), lambda n: (0, 0)),              # b2
                pl.BlockSpec((2, HW), lambda n: (0, 0)),                  # edge
            ],
            out_specs=pl.BlockSpec((1, cout_p, HW), lambda n: (n, 0, 0)),
            scratch_shapes=[pltpu.VMEM((cmax_p, PAD + HW + PAD), jnp.float32)],
        ),
        compiler_params=pltpu.CompilerParams(
            dimension_semantics=("parallel",),      # v7x: shard batch over TCs
            vmem_limit_bytes=32 * 1024 * 1024),
        cost_estimate=pl.CostEstimate(flops=int(flops), transcendentals=0,
                                      bytes_accessed=int(bytes_accessed)),
    )(x2d, w1t, b1p, w2t, b2p, edge)

    # MaxPool2d(2,2): pick even-row / even-col anchors (free strided slice).
    return full.reshape(N, cout_p, H, W)[:, :Cout, ::2, ::2]


# ---------------------------------------------------------------------------
# Pure-JAX reference (sanity check)
# ---------------------------------------------------------------------------
def _ref_forward(x, w1, b1, w2, b2):
    def conv(v, w, b):
        y = lax.conv_general_dilated(
            v, w, window_strides=(1, 1), padding="SAME",
            dimension_numbers=("NCHW", "OIHW", "NCHW"),
            precision=lax.Precision.HIGHEST)
        y = y + b[None, :, None, None]
        return jnp.where(y > 0, y, 0.2 * y)

    y = conv(x, w1, b1)
    y = conv(y, w2, b2)
    return lax.reduce_window(y, -jnp.inf, lax.max,
                             (1, 1, 2, 2), (1, 1, 2, 2), "VALID")


# ---------------------------------------------------------------------------
if __name__ == "__main__":
    in_dim, out_dim = 4, 8
    N, H, W = 2, 16, 16

    key = jax.random.PRNGKey(0)
    kx, kw1, kb1, kw2, kb2 = jax.random.split(key, 5)

    x = jax.random.normal(kx, (N, in_dim, H, W), dtype=jnp.float32)
    # PyTorch nn.Conv2d layout: weight (out_ch, in_ch, 3, 3), bias (out_ch,)
    w1 = jax.random.normal(kw1, (out_dim, in_dim, 3, 3), dtype=jnp.float32) * 0.1
    b1 = jax.random.normal(kb1, (out_dim,), dtype=jnp.float32) * 0.1
    w2 = jax.random.normal(kw2, (out_dim, out_dim, 3, 3), dtype=jnp.float32) * 0.1
    b2 = jax.random.normal(kb2, (out_dim,), dtype=jnp.float32) * 0.1

    out = jax.block_until_ready(double_conv_forward(x, w1, b1, w2, b2))
    ref = _ref_forward(x, w1, b1, w2, b2)

    assert out.shape == (N, out_dim, H // 2, W // 2), out.shape
    max_err = float(jnp.max(jnp.abs(out - ref)))
    # bf16 MXU operands with f32 accumulation: tolerance re-validated per review.
    assert max_err < 3e-2, max_err
    print("KERNEL_OK")
</pallas_src>

<mosaic_0001>
module attributes {stable_mosaic.version = 11 : i64} {
  func.func @_double_conv_kernel(%arg0: i32, %arg1: memref<1x8x256xf32, #tpu.memory_space<vmem>>, %arg2: memref<9x8x8xbf16, #tpu.memory_space<vmem>>, %arg3: memref<8x1xf32, #tpu.memory_space<vmem>>, %arg4: memref<9x8x8xbf16, #tpu.memory_space<vmem>>, %arg5: memref<8x1xf32, #tpu.memory_space<vmem>>, %arg6: memref<2x256xf32, #tpu.memory_space<vmem>>, %arg7: memref<1x8x256xf32, #tpu.memory_space<vmem>>, %arg8: memref<8x512xf32, #tpu.memory_space<vmem>>) attributes {dimension_semantics = [#tpu.dimension_semantics<parallel>], iteration_bounds = array<i64: 2>, scalar_prefetch = 0 : i64, scratch_operands = 1 : i64, tpu.core_type = #tpu.core_type<tc>, window_params = [{transform_indices = @transform_0, window_bounds = array<i64: 1, 8, 256>}, {pipeline_mode = #tpu.pipeline_mode<synchronous>, transform_indices = @transform_1, window_bounds = array<i64: 9, 8, 8>}, {pipeline_mode = #tpu.pipeline_mode<synchronous>, transform_indices = @transform_2, window_bounds = array<i64: 8, 1>}, {pipeline_mode = #tpu.pipeline_mode<synchronous>, transform_indices = @transform_3, window_bounds = array<i64: 9, 8, 8>}, {pipeline_mode = #tpu.pipeline_mode<synchronous>, transform_indices = @transform_4, window_bounds = array<i64: 8, 1>}, {pipeline_mode = #tpu.pipeline_mode<synchronous>, transform_indices = @transform_5, window_bounds = array<i64: 2, 256>}, {transform_indices = @transform_6, window_bounds = array<i64: 1, 8, 256>}]} {
    %c0 = arith.constant 0 : index
    %c0_0 = arith.constant 0 : index
    %0 = vector.load %arg6[%c0, %c0_0] : memref<2x256xf32, #tpu.memory_space<vmem>>, vector<1x256xf32>
    %c1 = arith.constant 1 : index
    %c0_1 = arith.constant 0 : index
    %1 = vector.load %arg6[%c1, %c0_1] : memref<2x256xf32, #tpu.memory_space<vmem>>, vector<1x256xf32>
    %cst = arith.constant 0.000000e+00 : f32
    %2 = vector.broadcast %cst : f32 to vector<8x128xf32>
    %c0_2 = arith.constant 0 : index
    %c0_3 = arith.constant 0 : index
    %3 = vector.load %arg8[%c0_2, %c0_3] : memref<8x512xf32, #tpu.memory_space<vmem>>, vector<8x128xf32>
    tpu.vector_store %arg8[%c0_2, %c0_3], %2 {strides = array<i32>} : memref<8x512xf32, #tpu.memory_space<vmem>>, vector<8x128xf32>,
    %cst_4 = arith.constant 0.000000e+00 : f32
    %4 = vector.broadcast %cst_4 : f32 to vector<8x128xf32>
    %c0_5 = arith.constant 0 : index
    %c384 = arith.constant 384 : index
    %5 = vector.load %arg8[%c0_5, %c384] : memref<8x512xf32, #tpu.memory_space<vmem>>, vector<8x128xf32>
    tpu.vector_store %arg8[%c0_5, %c384], %4 {strides = array<i32>} : memref<8x512xf32, #tpu.memory_space<vmem>>, vector<8x128xf32>,
    %c0_6 = arith.constant 0 : index
    %c0_7 = arith.constant 0 : index
    %c0_8 = arith.constant 0 : index
    %6 = vector.load %arg1[%c0_6, %c0_7, %c0_8] : memref<1x8x256xf32, #tpu.memory_space<vmem>>, vector<1x8x256xf32>
    %7 = vector.shape_cast %6 : vector<1x8x256xf32> to vector<8x256xf32>
    %c0_9 = arith.constant 0 : index
    %c128 = arith.constant 128 : index
    %8 = vector.load %arg8[%c0_9, %c128] : memref<8x512xf32, #tpu.memory_space<vmem>>, vector<8x256xf32>
    tpu.vector_store %arg8[%c0_9, %c128], %7 {strides = array<i32>} : memref<8x512xf32, #tpu.memory_space<vmem>>, vector<8x256xf32>,
    %cst_10 = arith.constant 0.000000e+00 : f32
    %9 = vector.broadcast %cst_10 : f32 to vector<8x256xf32>
    %c0_11 = arith.constant 0 : index
    %c111 = arith.constant 111 : index
    %10 = vector.load %arg8[%c0_11, %c111] : memref<8x512xf32, #tpu.memory_space<vmem>>, vector<8x256xf32>
    %11 = vector.broadcast %0 : vector<1x256xf32> to vector<8x256xf32>
    %12 = arith.mulf %10, %11 : vector<8x256xf32>
    %c0_12 = arith.constant 0 : index
    %c0_13 = arith.constant 0 : index
    %c0_14 = arith.constant 0 : index
    %13 = vector.load %arg2[%c0_12, %c0_13, %c0_14] : memref<9x8x8xbf16, #tpu.memory_space<vmem>>, vector<1x8x8xbf16>
    %14 = vector.shape_cast %13 : vector<1x8x8xbf16> to vector<8x8xbf16>
    %15 = arith.truncf %12 : vector<8x256xf32> to vector<8x256xbf16>
    %cst_15 = arith.constant dense<0.000000e+00> : vector<8x256xf32>
    %16 = tpu.matmul %14, %15, %cst_15 {dimension_numbers = #tpu.dot_dimension_numbers<[1], [0], [0], [1], [0, 0, 1, 1], [], []>} : vector<8x8xbf16>, vector<8x256xbf16>, vector<8x256xf32> -> vector<8x256xf32>
    %17 = arith.addf %9, %16 : vector<8x256xf32>
    %c0_16 = arith.constant 0 : index
    %c112 = arith.constant 112 : index
    %18 = vector.load %arg8[%c0_16, %c112] : memref<8x512xf32, #tpu.memory_space<vmem>>, vector<8x256xf32>
    %c1_17 = arith.constant 1 : index
    %c0_18 = arith.constant 0 : index
    %c0_19 = arith.constant 0 : index
    %19 = vector.load %arg2[%c1_17, %c0_18, %c0_19] : memref<9x8x8xbf16, #tpu.memory_space<vmem>>, vector<1x8x8xbf16>
    %20 = vector.shape_cast %19 : vector<1x8x8xbf16> to vector<8x8xbf16>
    %21 = arith.truncf %18 : vector<8x256xf32> to vector<8x256xbf16>
    %cst_20 = arith.constant dense<0.000000e+00> : vector<8x256xf32>
    %22 = tpu.matmul %20, %21, %cst_20 {dimension_numbers = #tpu.dot_dimension_numbers<[1], [0], [0], [1], [0, 0, 1, 1], [], []>} : vector<8x8xbf16>, vector<8x256xbf16>, vector<8x256xf32> -> vector<8x256xf32>
    %23 = arith.addf %17, %22 : vector<8x256xf32>
    %c0_21 = arith.constant 0 : index
    %c113 = arith.constant 113 : index
    %24 = vector.load %arg8[%c0_21, %c113] : memref<8x512xf32, #tpu.memory_space<vmem>>, vector<8x256xf32>
    %25 = vector.broadcast %1 : vector<1x256xf32> to vector<8x256xf32>
    %26 = arith.mulf %24, %25 : vector<8x256xf32>
    %c2 = arith.constant 2 : index
    %c0_22 = arith.constant 0 : index
    %c0_23 = arith.constant 0 : index
    %27 = vector.load %arg2[%c2, %c0_22, %c0_23] : memref<9x8x8xbf16, #tpu.memory_space<vmem>>, vector<1x8x8xbf16>
    %28 = vector.shape_cast %27 : vector<1x8x8xbf16> to vector<8x8xbf16>
    %29 = arith.truncf %26 : vector<8x256xf32> to vector<8x256xbf16>
    %cst_24 = arith.constant dense<0.000000e+00> : vector<8x256xf32>
    %30 = tpu.matmul %28, %29, %cst_24 {dimension_numbers = #tpu.dot_dimension_numbers<[1], [0], [0], [1], [0, 0, 1, 1], [], []>} : vector<8x8xbf16>, vector<8x256xbf16>, vector<8x256xf32> -> vector<8x256xf32>
    %31 = arith.addf %23, %30 : vector<8x256xf32>
    %c0_25 = arith.constant 0 : index
    %c127 = arith.constant 127 : index
    %32 = vector.load %arg8[%c0_25, %c127] : memref<8x512xf32, #tpu.memory_space<vmem>>, vector<8x256xf32>
    %33 = vector.broadcast %0 : vector<1x256xf32> to vector<8x256xf32>
    %34 = arith.mulf %32, %33 : vector<8x256xf32>
    %c3 = arith.constant 3 : index
    %c0_26 = arith.constant 0 : index
    %c0_27 = arith.constant 0 : index
    %35 = vector.load %arg2[%c3, %c0_26, %c0_27] : memref<9x8x8xbf16, #tpu.memory_space<vmem>>, vector<1x8x8xbf16>
    %36 = vector.shape_cast %35 : vector<1x8x8xbf16> to vector<8x8xbf16>
    %37 = arith.truncf %34 : vector<8x256xf32> to vector<8x256xbf16>
    %cst_28 = arith.constant dense<0.000000e+00> : vector<8x256xf32>
    %38 = tpu.matmul %36, %37, %cst_28 {dimension_numbers = #tpu.dot_dimension_numbers<[1], [0], [0], [1], [0, 0, 1, 1], [], []>} : vector<8x8xbf16>, vector<8x256xbf16>, vector<8x256xf32> -> vector<8x256xf32>
    %39 = arith.addf %31, %38 : vector<8x256xf32>
    %c0_29 = arith.constant 0 : index
    %c128_30 = arith.constant 128 : index
    %40 = vector.load %arg8[%c0_29, %c128_30] : memref<8x512xf32, #tpu.memory_space<vmem>>, vector<8x256xf32>
    %c4 = arith.constant 4 : index
    %c0_31 = arith.constant 0 : index
    %c0_32 = arith.constant 0 : index
    %41 = vector.load %arg2[%c4, %c0_31, %c0_32] : memref<9x8x8xbf16, #tpu.memory_space<vmem>>, vector<1x8x8xbf16>
    %42 = vector.shape_cast %41 : vector<1x8x8xbf16> to vector<8x8xbf16>
    %43 = arith.truncf %40 : vector<8x256xf32> to vector<8x256xbf16>
    %cst_33 = arith.constant dense<0.000000e+00> : vector<8x256xf32>
    %44 = tpu.matmul %42, %43, %cst_33 {dimension_numbers = #tpu.dot_dimension_numbers<[1], [0], [0], [1], [0, 0, 1, 1], [], []>} : vector<8x8xbf16>, vector<8x256xbf16>, vector<8x256xf32> -> vector<8x256xf32>
    %45 = arith.addf %39, %44 : vector<8x256xf32>
    %c0_34 = arith.constant 0 : index
    %c129 = arith.constant 129 : index
    %46 = vector.load %arg8[%c0_34, %c129] : memref<8x512xf32, #tpu.memory_space<vmem>>, vector<8x256xf32>
    %47 = vector.broadcast %1 : vector<1x256xf32> to vector<8x256xf32>
    %48 = arith.mulf %46, %47 : vector<8x256xf32>
    %c5 = arith.constant 5 : index
    %c0_35 = arith.constant 0 : index
    %c0_36 = arith.constant 0 : index
    %49 = vector.load %arg2[%c5, %c0_35, %c0_36] : memref<9x8x8xbf16, #tpu.memory_space<vmem>>, vector<1x8x8xbf16>
    %50 = vector.shape_cast %49 : vector<1x8x8xbf16> to vector<8x8xbf16>
    %51 = arith.truncf %48 : vector<8x256xf32> to vector<8x256xbf16>
    %cst_37 = arith.constant dense<0.000000e+00> : vector<8x256xf32>
    %52 = tpu.matmul %50, %51, %cst_37 {dimension_numbers = #tpu.dot_dimension_numbers<[1], [0], [0], [1], [0, 0, 1, 1], [], []>} : vector<8x8xbf16>, vector<8x256xbf16>, vector<8x256xf32> -> vector<8x256xf32>
    %53 = arith.addf %45, %52 : vector<8x256xf32>
    %c0_38 = arith.constant 0 : index
    %c143 = arith.constant 143 : index
    %54 = vector.load %arg8[%c0_38, %c143] : memref<8x512xf32, #tpu.memory_space<vmem>>, vector<8x256xf32>
    %55 = vector.broadcast %0 : vector<1x256xf32> to vector<8x256xf32>
    %56 = arith.mulf %54, %55 : vector<8x256xf32>
    %c6 = arith.constant 6 : index
    %c0_39 = arith.constant 0 : index
    %c0_40 = arith.constant 0 : index
    %57 = vector.load %arg2[%c6, %c0_39, %c0_40] : memref<9x8x8xbf16, #tpu.memory_space<vmem>>, vector<1x8x8xbf16>
    %58 = vector.shape_cast %57 : vector<1x8x8xbf16> to vector<8x8xbf16>
    %59 = arith.truncf %56 : vector<8x256xf32> to vector<8x256xbf16>
    %cst_41 = arith.constant dense<0.000000e+00> : vector<8x256xf32>
    %60 = tpu.matmul %58, %59, %cst_41 {dimension_numbers = #tpu.dot_dimension_numbers<[1], [0], [0], [1], [0, 0, 1, 1], [], []>} : vector<8x8xbf16>, vector<8x256xbf16>, vector<8x256xf32> -> vector<8x256xf32>
    %61 = arith.addf %53, %60 : vector<8x256xf32>
    %c0_42 = arith.constant 0 : index
    %c144 = arith.constant 144 : index
    %62 = vector.load %arg8[%c0_42, %c144] : memref<8x512xf32, #tpu.memory_space<vmem>>, vector<8x256xf32>
    %c7 = arith.constant 7 : index
    %c0_43 = arith.constant 0 : index
    %c0_44 = arith.constant 0 : index
    %63 = vector.load %arg2[%c7, %c0_43, %c0_44] : memref<9x8x8xbf16, #tpu.memory_space<vmem>>, vector<1x8x8xbf16>
    %64 = vector.shape_cast %63 : vector<1x8x8xbf16> to vector<8x8xbf16>
    %65 = arith.truncf %62 : vector<8x256xf32> to vector<8x256xbf16>
    %cst_45 = arith.constant dense<0.000000e+00> : vector<8x256xf32>
    %66 = tpu.matmul %64, %65, %cst_45 {dimension_numbers = #tpu.dot_dimension_numbers<[1], [0], [0], [1], [0, 0, 1, 1], [], []>} : vector<8x8xbf16>, vector<8x256xbf16>, vector<8x256xf32> -> vector<8x256xf32>
    %67 = arith.addf %61, %66 : vector<8x256xf32>
    %c0_46 = arith.constant 0 : index
    %c145 = arith.constant 145 : index
    %68 = vector.load %arg8[%c0_46, %c145] : memref<8x512xf32, #tpu.memory_space<vmem>>, vector<8x256xf32>
    %69 = vector.broadcast %1 : vector<1x256xf32> to vector<8x256xf32>
    %70 = arith.mulf %68, %69 : vector<8x256xf32>
    %c8 = arith.constant 8 : index
    %c0_47 = arith.constant 0 : index
    %c0_48 = arith.constant 0 : index
    %71 = vector.load %arg2[%c8, %c0_47, %c0_48] : memref<9x8x8xbf16, #tpu.memory_space<vmem>>, vector<1x8x8xbf16>
    %72 = vector.shape_cast %71 : vector<1x8x8xbf16> to vector<8x8xbf16>
    %73 = arith.truncf %70 : vector<8x256xf32> to vector<8x256xbf16>
    %cst_49 = arith.constant dense<0.000000e+00> : vector<8x256xf32>
    %74 = tpu.matmul %72, %73, %cst_49 {dimension_numbers = #tpu.dot_dimension_numbers<[1], [0], [0], [1], [0, 0, 1, 1], [], []>} : vector<8x8xbf16>, vector<8x256xbf16>, vector<8x256xf32> -> vector<8x256xf32>
    %75 = arith.addf %67, %74 : vector<8x256xf32>
    %c0_50 = arith.constant 0 : index
    %c0_51 = arith.constant 0 : index
    %76 = vector.load %arg3[%c0_50, %c0_51] : memref<8x1xf32, #tpu.memory_space<vmem>>, vector<8x1xf32>
    %77 = vector.broadcast %76 : vector<8x1xf32> to vector<8x256xf32>
    %78 = arith.addf %75, %77 : vector<8x256xf32>
    %cst_52 = arith.constant 2.000000e-01 : f32
    %79 = vector.broadcast %cst_52 : f32 to vector<8x256xf32>
    %80 = arith.mulf %79, %78 : vector<8x256xf32>
    %81 = arith.maximumf %78, %80 : vector<8x256xf32>
    %c0_53 = arith.constant 0 : index
    %c128_54 = arith.constant 128 : index
    %82 = vector.load %arg8[%c0_53, %c128_54] : memref<8x512xf32, #tpu.memory_space<vmem>>, vector<8x256xf32>
    tpu.vector_store %arg8[%c0_53, %c128_54], %81 {strides = array<i32>} : memref<8x512xf32, #tpu.memory_space<vmem>>, vector<8x256xf32>,
    %cst_55 = arith.constant 0.000000e+00 : f32
    %83 = vector.broadcast %cst_55 : f32 to vector<8x256xf32>
    %c0_56 = arith.constant 0 : index
    %c111_57 = arith.constant 111 : index
    %84 = vector.load %arg8[%c0_56, %c111_57] : memref<8x512xf32, #tpu.memory_space<vmem>>, vector<8x256xf32>
    %85 = vector.broadcast %0 : vector<1x256xf32> to vector<8x256xf32>
    %86 = arith.mulf %84, %85 : vector<8x256xf32>
    %c0_58 = arith.constant 0 : index
    %c0_59 = arith.constant 0 : index
    %c0_60 = arith.constant 0 : index
    %87 = vector.load %arg4[%c0_58, %c0_59, %c0_60] : memref<9x8x8xbf16, #tpu.memory_space<vmem>>, vector<1x8x8xbf16>
    %88 = vector.shape_cast %87 : vector<1x8x8xbf16> to vector<8x8xbf16>
    %89 = arith.truncf %86 : vector<8x256xf32> to vector<8x256xbf16>
    %cst_61 = arith.constant dense<0.000000e+00> : vector<8x256xf32>
    %90 = tpu.matmul %88, %89, %cst_61 {dimension_numbers = #tpu.dot_dimension_numbers<[1], [0], [0], [1], [0, 0, 1, 1], [], []>} : vector<8x8xbf16>, vector<8x256xbf16>, vector<8x256xf32> -> vector<8x256xf32>
    %91 = arith.addf %83, %90 : vector<8x256xf32>
    %c0_62 = arith.constant 0 : index
    %c112_63 = arith.constant 112 : index
    %92 = vector.load %arg8[%c0_62, %c112_63] : memref<8x512xf32, #tpu.memory_space<vmem>>, vector<8x256xf32>
    %c1_64 = arith.constant 1 : index
    %c0_65 = arith.constant 0 : index
    %c0_66 = arith.constant 0 : index
    %93 = vector.load %arg4[%c1_64, %c0_65, %c0_66] : memref<9x8x8xbf16, #tpu.memory_space<vmem>>, vector<1x8x8xbf16>
    %94 = vector.shape_cast %93 : vector<1x8x8xbf16> to vector<8x8xbf16>
    %95 = arith.truncf %92 : vector<8x256xf32> to vector<8x256xbf16>
    %cst_67 = arith.constant dense<0.000000e+00> : vector<8x256xf32>
    %96 = tpu.matmul %94, %95, %cst_67 {dimension_numbers = #tpu.dot_dimension_numbers<[1], [0], [0], [1], [0, 0, 1, 1], [], []>} : vector<8x8xbf16>, vector<8x256xbf16>, vector<8x256xf32> -> vector<8x256xf32>
    %97 = arith.addf %91, %96 : vector<8x256xf32>
    %c0_68 = arith.constant 0 : index
    %c113_69 = arith.constant 113 : index
    %98 = vector.load %arg8[%c0_68, %c113_69] : memref<8x512xf32, #tpu.memory_space<vmem>>, vector<8x256xf32>
    %99 = vector.broadcast %1 : vector<1x256xf32> to vector<8x256xf32>
    %100 = arith.mulf %98, %99 : vector<8x256xf32>
    %c2_70 = arith.constant 2 : index
    %c0_71 = arith.constant 0 : index
    %c0_72 = arith.constant 0 : index
    %101 = vector.load %arg4[%c2_70, %c0_71, %c0_72] : memref<9x8x8xbf16, #tpu.memory_space<vmem>>, vector<1x8x8xbf16>
    %102 = vector.shape_cast %101 : vector<1x8x8xbf16> to vector<8x8xbf16>
    %103 = arith.truncf %100 : vector<8x256xf32> to vector<8x256xbf16>
    %cst_73 = arith.constant dense<0.000000e+00> : vector<8x256xf32>
    %104 = tpu.matmul %102, %103, %cst_73 {dimension_numbers = #tpu.dot_dimension_numbers<[1], [0], [0], [1], [0, 0, 1, 1], [], []>} : vector<8x8xbf16>, vector<8x256xbf16>, vector<8x256xf32> -> vector<8x256xf32>
    %105 = arith.addf %97, %104 : vector<8x256xf32>
    %c0_74 = arith.constant 0 : index
    %c127_75 = arith.constant 127 : index
    %106 = vector.load %arg8[%c0_74, %c127_75] : memref<8x512xf32, #tpu.memory_space<vmem>>, vector<8x256xf32>
    %107 = vector.broadcast %0 : vector<1x256xf32> to vector<8x256xf32>
    %108 = arith.mulf %106, %107 : vector<8x256xf32>
    %c3_76 = arith.constant 3 : index
    %c0_77 = arith.constant 0 : index
    %c0_78 = arith.constant 0 : index
    %109 = vector.load %arg4[%c3_76, %c0_77, %c0_78] : memref<9x8x8xbf16, #tpu.memory_space<vmem>>, vector<1x8x8xbf16>
    %110 = vector.shape_cast %109 : vector<1x8x8xbf16> to vector<8x8xbf16>
    %111 = arith.truncf %108 : vector<8x256xf32> to vector<8x256xbf16>
    %cst_79 = arith.constant dense<0.000000e+00> : vector<8x256xf32>
    %112 = tpu.matmul %110, %111, %cst_79 {dimension_numbers = #tpu.dot_dimension_numbers<[1], [0], [0], [1], [0, 0, 1, 1], [], []>} : vector<8x8xbf16>, vector<8x256xbf16>, vector<8x256xf32> -> vector<8x256xf32>
    %113 = arith.addf %105, %112 : vector<8x256xf32>
    %c0_80 = arith.constant 0 : index
    %c128_81 = arith.constant 128 : index
    %114 = vector.load %arg8[%c0_80, %c128_81] : memref<8x512xf32, #tpu.memory_space<vmem>>, vector<8x256xf32>
    %c4_82 = arith.constant 4 : index
    %c0_83 = arith.constant 0 : index
    %c0_84 = arith.constant 0 : index
    %115 = vector.load %arg4[%c4_82, %c0_83, %c0_84] : memref<9x8x8xbf16, #tpu.memory_space<vmem>>, vector<1x8x8xbf16>
    %116 = vector.shape_cast %115 : vector<1x8x8xbf16> to vector<8x8xbf16>
    %117 = arith.truncf %114 : vector<8x256xf32> to vector<8x256xbf16>
    %cst_85 = arith.constant dense<0.000000e+00> : vector<8x256xf32>
    %118 = tpu.matmul %116, %117, %cst_85 {dimension_numbers = #tpu.dot_dimension_numbers<[1], [0], [0], [1], [0, 0, 1, 1], [], []>} : vector<8x8xbf16>, vector<8x256xbf16>, vector<8x256xf32> -> vector<8x256xf32>
    %119 = arith.addf %113, %118 : vector<8x256xf32>
    %c0_86 = arith.constant 0 : index
    %c129_87 = arith.constant 129 : index
    %120 = vector.load %arg8[%c0_86, %c129_87] : memref<8x512xf32, #tpu.memory_space<vmem>>, vector<8x256xf32>
    %121 = vector.broadcast %1 : vector<1x256xf32> to vector<8x256xf32>
    %122 = arith.mulf %120, %121 : vector<8x256xf32>
    %c5_88 = arith.constant 5 : index
    %c0_89 = arith.constant 0 : index
    %c0_90 = arith.constant 0 : index
    %123 = vector.load %arg4[%c5_88, %c0_89, %c0_90] : memref<9x8x8xbf16, #tpu.memory_space<vmem>>, vector<1x8x8xbf16>
    %124 = vector.shape_cast %123 : vector<1x8x8xbf16> to vector<8x8xbf16>
    %125 = arith.truncf %122 : vector<8x256xf32> to vector<8x256xbf16>
    %cst_91 = arith.constant dense<0.000000e+00> : vector<8x256xf32>
    %126 = tpu.matmul %124, %125, %cst_91 {dimension_numbers = #tpu.dot_dimension_numbers<[1], [0], [0], [1], [0, 0, 1, 1], [], []>} : vector<8x8xbf16>, vector<8x256xbf16>, vector<8x256xf32> -> vector<8x256xf32>
    %127 = arith.addf %119, %126 : vector<8x256xf32>
    %c0_92 = arith.constant 0 : index
    %c143_93 = arith.constant 143 : index
    %128 = vector.load %arg8[%c0_92, %c143_93] : memref<8x512xf32, #tpu.memory_space<vmem>>, vector<8x256xf32>
    %129 = vector.broadcast %0 : vector<1x256xf32> to vector<8x256xf32>
    %130 = arith.mulf %128, %129 : vector<8x256xf32>
    %c6_94 = arith.constant 6 : index
    %c0_95 = arith.constant 0 : index
    %c0_96 = arith.constant 0 : index
    %131 = vector.load %arg4[%c6_94, %c0_95, %c0_96] : memref<9x8x8xbf16, #tpu.memory_space<vmem>>, vector<1x8x8xbf16>
    %132 = vector.shape_cast %131 : vector<1x8x8xbf16> to vector<8x8xbf16>
    %133 = arith.truncf %130 : vector<8x256xf32> to vector<8x256xbf16>
    %cst_97 = arith.constant dense<0.000000e+00> : vector<8x256xf32>
    %134 = tpu.matmul %132, %133, %cst_97 {dimension_numbers = #tpu.dot_dimension_numbers<[1], [0], [0], [1], [0, 0, 1, 1], [], []>} : vector<8x8xbf16>, vector<8x256xbf16>, vector<8x256xf32> -> vector<8x256xf32>
    %135 = arith.addf %127, %134 : vector<8x256xf32>
    %c0_98 = arith.constant 0 : index
    %c144_99 = arith.constant 144 : index
    %136 = vector.load %arg8[%c0_98, %c144_99] : memref<8x512xf32, #tpu.memory_space<vmem>>, vector<8x256xf32>
    %c7_100 = arith.constant 7 : index
    %c0_101 = arith.constant 0 : index
    %c0_102 = arith.constant 0 : index
    %137 = vector.load %arg4[%c7_100, %c0_101, %c0_102] : memref<9x8x8xbf16, #tpu.memory_space<vmem>>, vector<1x8x8xbf16>
    %138 = vector.shape_cast %137 : vector<1x8x8xbf16> to vector<8x8xbf16>
    %139 = arith.truncf %136 : vector<8x256xf32> to vector<8x256xbf16>
    %cst_103 = arith.constant dense<0.000000e+00> : vector<8x256xf32>
    %140 = tpu.matmul %138, %139, %cst_103 {dimension_numbers = #tpu.dot_dimension_numbers<[1], [0], [0], [1], [0, 0, 1, 1], [], []>} : vector<8x8xbf16>, vector<8x256xbf16>, vector<8x256xf32> -> vector<8x256xf32>
    %141 = arith.addf %135, %140 : vector<8x256xf32>
    %c0_104 = arith.constant 0 : index
    %c145_105 = arith.constant 145 : index
    %142 = vector.load %arg8[%c0_104, %c145_105] : memref<8x512xf32, #tpu.memory_space<vmem>>, vector<8x256xf32>
    %143 = vector.broadcast %1 : vector<1x256xf32> to vector<8x256xf32>
    %144 = arith.mulf %142, %143 : vector<8x256xf32>
    %c8_106 = arith.constant 8 : index
    %c0_107 = arith.constant 0 : index
    %c0_108 = arith.constant 0 : index
    %145 = vector.load %arg4[%c8_106, %c0_107, %c0_108] : memref<9x8x8xbf16, #tpu.memory_space<vmem>>, vector<1x8x8xbf16>
    %146 = vector.shape_cast %145 : vector<1x8x8xbf16> to vector<8x8xbf16>
    %147 = arith.truncf %144 : vector<8x256xf32> to vector<8x256xbf16>
    %cst_109 = arith.constant dense<0.000000e+00> : vector<8x256xf32>
    %148 = tpu.matmul %146, %147, %cst_109 {dimension_numbers = #tpu.dot_dimension_numbers<[1], [0], [0], [1], [0, 0, 1, 1], [], []>} : vector<8x8xbf16>, vector<8x256xbf16>, vector<8x256xf32> -> vector<8x256xf32>
    %149 = arith.addf %141, %148 : vector<8x256xf32>
    %c0_110 = arith.constant 0 : index
    %c0_111 = arith.constant 0 : index
    %150 = vector.load %arg5[%c0_110, %c0_111] : memref<8x1xf32, #tpu.memory_space<vmem>>, vector<8x1xf32>
    %151 = vector.broadcast %150 : vector<8x1xf32> to vector<8x256xf32>
    %152 = arith.addf %149, %151 : vector<8x256xf32>
    %cst_112 = arith.constant 2.000000e-01 : f32
    %153 = vector.broadcast %cst_112 : f32 to vector<8x256xf32>
    %154 = arith.mulf %153, %152 : vector<8x256xf32>
    %155 = arith.maximumf %152, %154 : vector<8x256xf32>
    %c0_113 = arith.constant 0 : index
    %c128_114 = arith.constant 128 : index
    %156 = vector.load %arg8[%c0_113, %c128_114] : memref<8x512xf32, #tpu.memory_space<vmem>>, vector<8x256xf32>
    tpu.vector_store %arg8[%c0_113, %c128_114], %155 {strides = array<i32>} : memref<8x512xf32, #tpu.memory_space<vmem>>, vector<8x256xf32>,
    %c0_115 = arith.constant 0 : index
    %c129_116 = arith.constant 129 : index
    %157 = vector.load %arg8[%c0_115, %c129_116] : memref<8x512xf32, #tpu.memory_space<vmem>>, vector<8x256xf32>
    %158 = arith.maximumf %155, %157 : vector<8x256xf32>
    %c0_117 = arith.constant 0 : index
    %c144_118 = arith.constant 144 : index
    %159 = vector.load %arg8[%c0_117, %c144_118] : memref<8x512xf32, #tpu.memory_space<vmem>>, vector<8x256xf32>
    %c0_119 = arith.constant 0 : index
    %c145_120 = arith.constant 145 : index
    %160 = vector.load %arg8[%c0_119, %c145_120] : memref<8x512xf32, #tpu.memory_space<vmem>>, vector<8x256xf32>
    %161 = arith.maximumf %159, %160 : vector<8x256xf32>
    %162 = arith.maximumf %158, %161 : vector<8x256xf32>
    %c0_121 = arith.constant 0 : index
    %c0_122 = arith.constant 0 : index
    %c0_123 = arith.constant 0 : index
    %163 = vector.load %arg7[%c0_121, %c0_122, %c0_123] : memref<1x8x256xf32, #tpu.memory_space<vmem>>, vector<1x8x256xf32>
    %164 = vector.shape_cast %163 : vector<1x8x256xf32> to vector<8x256xf32>
    %165 = vector.shape_cast %162 : vector<8x256xf32> to vector<1x8x256xf32>
    tpu.vector_store %arg7[%c0_121, %c0_122, %c0_123], %165 {strides = array<i32>} : memref<1x8x256xf32, #tpu.memory_space<vmem>>, vector<1x8x256xf32>,
    return
  }
  func.func @transform_0(%arg0: i32) -> (i32, i32, i32) {
    %c0_i32 = arith.constant 0 : i32
    %c0_i32_0 = arith.constant 0 : i32
    %c0_i32_1 = arith.constant 0 : i32
    return %arg0, %c0_i32, %c0_i32_0 : i32, i32, i32
  }
  func.func @transform_1(%arg0: i32) -> (i32, i32, i32) {
    %c0_i32 = arith.constant 0 : i32
    %c0_i32_0 = arith.constant 0 : i32
    %c0_i32_1 = arith.constant 0 : i32
    %c0_i32_2 = arith.constant 0 : i32
    return %c0_i32, %c0_i32_0, %c0_i32_1 : i32, i32, i32
  }
  func.func @transform_2(%arg0: i32) -> (i32, i32) {
    %c0_i32 = arith.constant 0 : i32
    %c0_i32_0 = arith.constant 0 : i32
    %c0_i32_1 = arith.constant 0 : i32
    return %c0_i32, %c0_i32_0 : i32, i32
  }
  func.func @transform_3(%arg0: i32) -> (i32, i32, i32) {
    %c0_i32 = arith.constant 0 : i32
    %c0_i32_0 = arith.constant 0 : i32
    %c0_i32_1 = arith.constant 0 : i32
    %c0_i32_2 = arith.constant 0 : i32
    return %c0_i32, %c0_i32_0, %c0_i32_1 : i32, i32, i32
  }
  func.func @transform_4(%arg0: i32) -> (i32, i32) {
    %c0_i32 = arith.constant 0 : i32
    %c0_i32_0 = arith.constant 0 : i32
    %c0_i32_1 = arith.constant 0 : i32
    return %c0_i32, %c0_i32_0 : i32, i32
  }
  func.func @transform_5(%arg0: i32) -> (i32, i32) {
    %c0_i32 = arith.constant 0 : i32
    %c0_i32_0 = arith.constant 0 : i32
    %c0_i32_1 = arith.constant 0 : i32
    return %c0_i32, %c0_i32_0 : i32, i32
  }
  func.func @transform_6(%arg0: i32) -> (i32, i32, i32) {
    %c0_i32 = arith.constant 0 : i32
    %c0_i32_0 = arith.constant 0 : i32
    %c0_i32_1 = arith.constant 0 : i32
    return %arg0, %c0_i32, %c0_i32_0 : i32, i32, i32
  }
}

</mosaic_0001>

<llo_original>
// kernel: double_conv_forward.1
$region0: #{double_conv_forward.1}
  #allocation0 [shape = 'u32[]', space=smem, size = 0x4, offset = 0x4, fixed_abs, tag = 'smem constant byte address 0x4 - core index']
  #allocation1 [shape = 'u32[144,128]{1,0:T(1,128)}', space=vmem, size = 0x12000, scoped, tag = 'internal scratch']
  #allocation2 [shape = 'f32[8,512]{1,0:T(8,128)}', space=vmem, size = 0x4000, scoped, tag = 'scratch operand']
  %s0 = inlined_call_operand.vmem [shape: f32[2,8,256], index: 0, kind: input, shape index: {}]
  %s1 = inlined_call_operand.vmem [shape: bf16[9,8,8], index: 1, kind: input, shape index: {}]
  %s2 = inlined_call_operand.vmem [shape: f32[8,1], index: 2, kind: input, shape index: {}]
  %s3 = inlined_call_operand.vmem [shape: bf16[9,8,8], index: 3, kind: input, shape index: {}]
  %s4 = inlined_call_operand.vmem [shape: f32[8,1], index: 4, kind: input, shape index: {}]
  %s5 = inlined_call_operand.vmem [shape: f32[2,256], index: 5, kind: input, shape index: {}]
  %s6 = inlined_call_operand.vmem [shape: f32[2,8,256], index: 6, kind: output, shape index: {}]
  %s7 = sld [smem:[#allocation0]]
  $region57: #{double_conv_forward.1} parent=0
    _
  %s9 = ssub.s32 1, %s7
  %s10 = scalar_select 0, %s9, %s7
  loop: start=0, step=1, limit=4
  $region2: #{double_conv_forward.1} parent=0 // loop_pre_header
    _
  $region3: #{double_conv_forward.1} parent=0 // loop_header
    %s12 = sphi 0, %s16
    %p13 = scmp.ge.s32.totalorder %s12, 4
    %s22 = sphi 0, %s24
    %s25 = sphi 0, %s22
    %s26 = sphi 0, %s25
    %s42 = sphi 0, %s26
    %s46 = sphi 0, %s46
    %s48 = sphi 0, %s46
    %s49 = sphi 0, %s48
    %s63 = sphi 0, %s49
    %s67 = sphi 0, %s67
    %s69 = sphi 0, %s67
    %s70 = sphi 0, %s69
    %s84 = sphi 0, %s70
    %s88 = sphi 0, %s88
    %s90 = sphi 0, %s88
    %s91 = sphi 0, %s90
    %s105 = sphi 0, %s91
    %s109 = sphi 0, %s109
    %s111 = sphi 0, %s109
    %s112 = sphi 0, %s111
    %s126 = sphi 0, %s112
    %s130 = sphi 0, %s130
    %s132 = sphi 0, %s130
    %s133 = sphi 0, %s132
    %s147 = sphi 0, %s133
    %s153 = sphi 0, %s155
    %s156 = sphi 0, %s153
    %s157 = sphi 0, %s156
    %s173 = sphi 0, %s157
  $region4: #{double_conv_forward.1} parent=0 // loop_header_branch
    %15 = sbr.rel (%p13) target = $region8
  $region5: #{double_conv_forward.1} parent=0 // loop_body
    %s17 = ssub.s32 %s12, 1
    %s18 = ssub.s32 %s12, 2
    %s19 = sadd.s32 %s12, 1
    %s20 = ssub.s32 %s12, %s19
    %p21 = scmp.eq.s32.totalorder %s20, 0
    %s23 = sadd.s32 %s22, 1
    %s24 = scalar_select %p21, %s22, %s23
    %p27 = pneg %p21
    %p28 = scmp.eq.s32.totalorder %s12, 1
    %p29 = por %p27, %p28
    %p30 = scmp.ne.s32.totalorder %s22, %s25
    %p31 = scmp.eq.s32.totalorder %s12, 0
    %p32 = por %p30, %p31
    %p33 = scmp.ne.s32.totalorder %s22, %s25
    %p34 = scmp.eq.s32.totalorder %s17, 1
    %p35 = por %p33, %p34
    %p36 = scmp.ne.s32.totalorder %s25, %s26
    %p37 = scmp.eq.s32.totalorder %s17, 0
    %p38 = por %p36, %p37
    %p39 = scmp.ne.s32.totalorder %s25, %s26
    %p40 = scmp.eq.s32.totalorder %s18, 1
    %p41 = por %p39, %p40
    %p43 = scmp.ne.s32.totalorder %s26, %s42
    %p44 = scmp.eq.s32.totalorder %s18, 0
    %p45 = por %p43, %p44
    %s47 = sadd.s32 %s46, 1
    %p50 = scmp.eq.s32.totalorder %s12, 1
    %p51 = scmp.ne.s32.totalorder %s46, %s48
    %p52 = scmp.eq.s32.totalorder %s12, 0
    %p53 = por %p51, %p52
    %p54 = scmp.ne.s32.totalorder %s46, %s48
    %p55 = scmp.eq.s32.totalorder %s17, 1
    %p56 = por %p54, %p55
    %p57 = scmp.ne.s32.totalorder %s48, %s49
    %p58 = scmp.eq.s32.totalorder %s17, 0
    %p59 = por %p57, %p58
    %p60 = scmp.ne.s32.totalorder %s48, %s49
    %p61 = scmp.eq.s32.totalorder %s18, 1
    %p62 = por %p60, %p61
    %p64 = scmp.ne.s32.totalorder %s49, %s63
    %p65 = scmp.eq.s32.totalorder %s18, 0
    %p66 = por %p64, %p65
    %s68 = sadd.s32 %s67, 1
    %p71 = scmp.eq.s32.totalorder %s12, 1
    %p72 = scmp.ne.s32.totalorder %s67, %s69
    %p73 = scmp.eq.s32.totalorder %s12, 0
    %p74 = por %p72, %p73
    %p75 = scmp.ne.s32.totalorder %s67, %s69
    %p76 = scmp.eq.s32.totalorder %s17, 1
    %p77 = por %p75, %p76
    %p78 = scmp.ne.s32.totalorder %s69, %s70
    %p79 = scmp.eq.s32.totalorder %s17, 0
    %p80 = por %p78, %p79
    %p81 = scmp.ne.s32.totalorder %s69, %s70
    %p82 = scmp.eq.s32.totalorder %s18, 1
    %p83 = por %p81, %p82
    %p85 = scmp.ne.s32.totalorder %s70, %s84
    %p86 = scmp.eq.s32.totalorder %s18, 0
    %p87 = por %p85, %p86
    %s89 = sadd.s32 %s88, 1
    %p92 = scmp.eq.s32.totalorder %s12, 1
    %p93 = scmp.ne.s32.totalorder %s88, %s90
    %p94 = scmp.eq.s32.totalorder %s12, 0
    %p95 = por %p93, %p94
    %p96 = scmp.ne.s32.totalorder %s88, %s90
    %p97 = scmp.eq.s32.totalorder %s17, 1
    %p98 = por %p96, %p97
    %p99 = scmp.ne.s32.totalorder %s90, %s91
    %p100 = scmp.eq.s32.totalorder %s17, 0
    %p101 = por %p99, %p100
    %p102 = scmp.ne.s32.totalorder %s90, %s91
    %p103 = scmp.eq.s32.totalorder %s18, 1
    %p104 = por %p102, %p103
    %p106 = scmp.ne.s32.totalorder %s91, %s105
    %p107 = scmp.eq.s32.totalorder %s18, 0
    %p108 = por %p106, %p107
    %s110 = sadd.s32 %s109, 1
    %p113 = scmp.eq.s32.totalorder %s12, 1
    %p114 = scmp.ne.s32.totalorder %s109, %s111
    %p115 = scmp.eq.s32.totalorder %s12, 0
    %p116 = por %p114, %p115
    %p117 = scmp.ne.s32.totalorder %s109, %s111
    %p118 = scmp.eq.s32.totalorder %s17, 1
    %p119 = por %p117, %p118
    %p120 = scmp.ne.s32.totalorder %s111, %s112
    %p121 = scmp.eq.s32.totalorder %s17, 0
    %p122 = por %p120, %p121
    %p123 = scmp.ne.s32.totalorder %s111, %s112
    %p124 = scmp.eq.s32.totalorder %s18, 1
    %p125 = por %p123, %p124
    %p127 = scmp.ne.s32.totalorder %s112, %s126
    %p128 = scmp.eq.s32.totalorder %s18, 0
    %p129 = por %p127, %p128
    %s131 = sadd.s32 %s130, 1
    %p134 = scmp.eq.s32.totalorder %s12, 1
    %p135 = scmp.ne.s32.totalorder %s130, %s132
    %p136 = scmp.eq.s32.totalorder %s12, 0
    %p137 = por %p135, %p136
    %p138 = scmp.ne.s32.totalorder %s130, %s132
    %p139 = scmp.eq.s32.totalorder %s17, 1
    %p140 = por %p138, %p139
    %p141 = scmp.ne.s32.totalorder %s132, %s133
    %p142 = scmp.eq.s32.totalorder %s17, 0
    %p143 = por %p141, %p142
    %p144 = scmp.ne.s32.totalorder %s132, %s133
    %p145 = scmp.eq.s32.totalorder %s18, 1
    %p146 = por %p144, %p145
    %p148 = scmp.ne.s32.totalorder %s133, %s147
    %p149 = scmp.eq.s32.totalorder %s18, 0
    %p150 = por %p148, %p149
    %s151 = ssub.s32 %s12, %s19
    %p152 = scmp.eq.s32.totalorder %s151, 0
    %s154 = sadd.s32 %s153, 1
    %s155 = scalar_select %p152, %s153, %s154
    %p158 = pneg %p152
    %p159 = scmp.eq.s32.totalorder %s12, 1
    %p160 = por %p158, %p159
    %p161 = scmp.ne.s32.totalorder %s153, %s156
    %p162 = scmp.eq.s32.totalorder %s12, 0
    %p163 = por %p161, %p162
    %p164 = scmp.ne.s32.totalorder %s153, %s156
    %p165 = scmp.eq.s32.totalorder %s17, 1
    %p166 = por %p164, %p165
    %p167 = scmp.ne.s32.totalorder %s156, %s157
    %p168 = scmp.eq.s32.totalorder %s17, 0
    %p169 = por %p167, %p168
    %p170 = scmp.ne.s32.totalorder %s156, %s157
    %p171 = scmp.eq.s32.totalorder %s18, 1
    %p172 = por %p170, %p171
    %p174 = scmp.ne.s32.totalorder %s157, %s173
    %p175 = scmp.eq.s32.totalorder %s18, 0
    %p176 = por %p174, %p175
    %p177 = scmp.le.s32.totalorder 1, %s12
    %p178 = scmp.lt.s32.totalorder %s12, 3
    %p179 = pnand %p177, %p178
    %p180 = pneg %p179
    // Predicated region
    $region9: #{double_conv_forward.1} parent=5 // pred_check
      _
    $region10: #{double_conv_forward.1} parent=5 // pred_check_branch
      %182 = sbr.rel (%p179) target = $region12
    $region11: #{double_conv_forward.1} parent=5 // pred_region
      %s183 = ssub.s32 %s12, 1
      // Predicated region
      $region13: #{double_conv_forward.1} parent=11 // pred_check
        %p184 = pneg %p59
      $region14: #{double_conv_forward.1} parent=11 // pred_check_branch
        %186 = sbr.rel (%p184) target = $region16
      $region15: #{double_conv_forward.1} parent=11 // pred_region
        _
      $region16: #{double_conv_forward.1} parent=11 // pred_fallthru
        _
      // Predicated region
      $region17: #{double_conv_forward.1} parent=11 // pred_check
        %p187 = pneg %p80
      $region18: #{double_conv_forward.1} parent=11 // pred_check_branch
        %189 = sbr.rel (%p187) target = $region20
      $region19: #{double_conv_forward.1} parent=11 // pred_region
        _
      $region20: #{double_conv_forward.1} parent=11 // pred_fallthru
        _
      // Predicated region
      $region21: #{double_conv_forward.1} parent=11 // pred_check
        %p190 = pneg %p101
      $region22: #{double_conv_forward.1} parent=11 // pred_check_branch
        %192 = sbr.rel (%p190) target = $region24
      $region23: #{double_conv_forward.1} parent=11 // pred_region
        _
      $region24: #{double_conv_forward.1} parent=11 // pred_fallthru
        _
      // Predicated region
      $region25: #{double_conv_forward.1} parent=11 // pred_check
        %p193 = pneg %p122
      $region26: #{double_conv_forward.1} parent=11 // pred_check_branch
        %195 = sbr.rel (%p193) target = $region28
      $region27: #{double_conv_forward.1} parent=11 // pred_region
        _
      $region28: #{double_conv_forward.1} parent=11 // pred_fallthru
        _
      // Predicated region
      $region29: #{double_conv_forward.1} parent=11 // pred_check
        %p196 = pneg %p143
      $region30: #{double_conv_forward.1} parent=11 // pred_check_branch
        %198 = sbr.rel (%p196) target = $region32
      $region31: #{double_conv_forward.1} parent=11 // pred_region
        _
      $region32: #{double_conv_forward.1} parent=11 // pred_fallthru
        _
    $region12: #{double_conv_forward.1} parent=5 // pred_fallthru
      _
    %p199 = scmp.lt.s32.totalorder %s12, 2
    // Predicated region
    $region33: #{double_conv_forward.1} parent=5 // pred_check
      %p200 = pneg %p199
    $region34: #{double_conv_forward.1} parent=5 // pred_check_branch
      %202 = sbr.rel (%p200) target = $region36
    $region35: #{double_conv_forward.1} parent=5 // pred_region
      // Predicated region
      $region37: #{double_conv_forward.1} parent=35 // pred_check
        %p203 = pneg %p32
      $region38: #{double_conv_forward.1} parent=35 // pred_check_branch
        %205 = sbr.rel (%p203) target = $region40
      $region39: #{double_conv_forward.1} parent=35 // pred_region
        %p206 = scmp.lt.s32.totalorder %s12, 1
        %s207 = scalar_select %p206, %s12, 1
        %s208 = smul.addr %s207, 2
        %s209 = smul.addr %s208, 8
        %s210 = scalar_lea.vmem %s0, %s209
      $region40: #{double_conv_forward.1} parent=35 // pred_fallthru
        _
    $region36: #{double_conv_forward.1} parent=5 // pred_fallthru
      _
    %p211 = scmp.le.s32.totalorder 1, %s12
    %p212 = scmp.lt.s32.totalorder %s12, 3
    %p213 = pnand %p211, %p212
    %p214 = pneg %p213
    // Predicated region
    $region41: #{double_conv_forward.1} parent=5 // pred_check
      _
    $region42: #{double_conv_forward.1} parent=5 // pred_check_branch
      %216 = sbr.rel (%p213) target = $region44
    $region43: #{double_conv_forward.1} parent=5 // pred_region
      %s217 = ssub.s32 %s12, 1
      %p218 = scmp.lt.s32.totalorder %s17, 1
      %s219 = scalar_select %p218, %s17, 1
      %s220 = smul.addr %s219, 2
      %s221 = smul.addr %s220, 8
      %s222 = scalar_lea.vmem %s0, %s221
      %p223 = pneg %p38
      %p224 = pneg %p35
      %p225 = pneg %p59
      %p226 = pneg %p56
      %p227 = pneg %p80
      %p228 = pneg %p77
      %p229 = pneg %p101
      %p230 = pneg %p98
      %p231 = pneg %p122
      %p232 = pneg %p119
      %p233 = pneg %p143
      %p234 = pneg %p140
      %p235 = pneg %p169
      %p236 = pneg %p166
      %p237 = scmp.lt.s32.totalorder %s17, 1
      %s238 = scalar_select %p237, %s17, 1
      %s239 = smul.addr %s238, 2
      %s240 = smul.addr %s239, 8
      %s241 = scalar_lea.vmem %s6, %s240
      %p242 = scmp.lt.s32.totalorder %s17, 1
      %s243 = scalar_select %p242, %s17, 1
      %s244 = smul.addr %s243, 2
      %s245 = smul.addr %s244, 8
      %s246 = scalar_lea.vmem %s0, %s245
      %p247 = scmp.lt.s32.totalorder %s17, 1
      %s248 = scalar_select %p247, %s17, 1
      %s249 = smul.addr %s248, 2
      %s250 = smul.addr %s249, 8
      %s251 = scalar_lea.vmem %s6, %s250
      %v253 = vld [vmem:[%s5] ss:$2 sm:$0x3]
      %s254 = scalar_lea.vmem %s5, 1
      %v255 = vld [vmem:[%s254] ss:$2 sm:$0x3]
      %256 = vst [vmem:[#allocation2] sm:$0xff] 0.0
      %257 = vst [vmem:[#allocation2 + $0x18] sm:$0xff] 0.0
      %v258 = vld [vmem:[%s246] sm:$0xff]
      %v259 = vld [vmem:[%s246 + $0x8] sm:$0xff]
      %260 = vst [vmem:[#allocation2 + $0x8] sm:$0xff] %v258
      %261 = vst [vmem:[#allocation2 + $0x10] sm:$0xff] %v259
      %v262 = vld [vmem:[#allocation2] sm:$0xff]
      %v263 = vld [vmem:[#allocation2 + $0x8] sm:$0xff]
      %v264 = vld [vmem:[#allocation2 + $0x10] sm:$0xff]
      %v266 = vlaneseq
      %v267 = vshrl.u32 %v266, 7
      %v268 = vsub.s32 0, %v267
      %v269 = vrot.slane %v253, %v268
      %v270 = vlaneseq
      %v271 = vshrl.u32 %v270, 7
      %v272 = vsub.s32 1, %v271
      %v273 = vrot.slane %v253, %v272
      %274 = vrot.lane.b32.xlu0 %v269, 111
      %v275 = vpop.permute.xlu0 %274
      %276 = vrot.lane.b32.xlu0 %v273, 111
      %v277 = vpop.permute.xlu0 %276
      %vm278 = vcmask 908288
      %v279 = vsel %vm278, %v275, %v277
      %v283 = vmul.f32 %v262, %v275
      %v284 = vmul.f32 %v263, %v279
      %v285 = vmul.f32 %v264, %v277
      %v286 = vld [vmem:[%s1] sm:$0xf]
      %v287 = vpack.c.bf16 %v283, %v283
      %v288 = vpack.c.bf16 %v284, %v284
      %v289 = vpack.c.bf16 %v285, %v285
      %s290 = scalar_lea.vmem %s1, 4
      %v291 = vld [vmem:[%s290] sm:$0xf]
      %v292 = vpack.c.bf16 %v262, %v262
      %v293 = vpack.c.bf16 %v263, %v263
      %v294 = vpack.c.bf16 %v264, %v264
      %298 = vrot.lane.b32.xlu0 %v292, 16
      %v299 = vpop.permute.xlu0 %298
      %300 = vrot.lane.b32.xlu0 %v293, 16
      %v301 = vpop.permute.xlu0 %300
      %302 = vrot.lane.b32.xlu0 %v294, 16
      %v303 = vpop.permute.xlu0 %302
      %vm304 = vcmask 130048
      %v305 = vsel %vm304, %v299, %v301
      %v306 = vsel %vm304, %v301, %v303
      %vm307 = vcmask 64512
      %v309 = vsel %vm307, %v291, 0
      %vm311 = vcmask 1043456
      %v313 = vsel %vm311, %v305, 0
      %v316 = vsel %vm311, %v306, 0
      %318 = vmatprep.subr.bf16.mxu0 0
      %319 = vmatpush1.bf16.msra.mxu0 0
      %320 = vmatprep.subr.bf16.mxu0 0
      %321 = vmatpush1.bf16.msra.mxu0 0
      %322 = vmatprep.subr.bf16.mxu0 0
      %323 = vmatpush1.bf16.msra.mxu0 0
      %324 = vmatprep.subr.bf16.mxu0 0
      %325 = vmatpush1.bf16.msra.mxu0 0
      %326 = vmatprep.subr.bf16.mxu0 0
      %327 = vmatpush1.bf16.msra.mxu0 0
      %328 = vmatprep.subr.bf16.mxu0 0
      %329 = vmatpush1.bf16.msra.mxu0 0
      %330 = vmatprep.subr.bf16.mxu0 0
      %331 = vmatpush1.bf16.msra.mxu0 0
      %332 = vmatprep.subr.bf16.mxu0 %v316
      %333 = vmatpush1.bf16.msra.mxu0 %v313
      %334 = vmatprep.subr.bf16.mxu0 0
      %335 = vmatpush2.bf16.msra.mxu0 0
      %336 = vmatprep.subr.bf16.mxu0 0
      %337 = vmatpush2.bf16.msra.mxu0 0
      %338 = vmatprep.subr.bf16.mxu0 0
      %339 = vmatpush2.bf16.msra.mxu0 0
      %340 = vmatprep.subr.bf16.mxu0 0
      %341 = vmatpush2.bf16.msra.mxu0 0
      %342 = vmatprep.subr.bf16.mxu0 0
      %343 = vmatpush2.bf16.msra.mxu0 0
      %344 = vmatprep.subr.bf16.mxu0 0
      %345 = vmatpush2.bf16.msra.mxu0 0
      %346 = vmatprep.subr.bf16.mxu0 0
      %347 = vmatpush2.bf16.msra.mxu0 0
      %348 = vmatprep.subr.bf16.mxu0 0
      %349 = vmatpush2.bf16.msra.mxu0 0
      %350 = vmatprep.mubr.bf16.mxu0 0
      %351 = vmatmul.mubr.bf16.gmra.mxu0 %v309
      %v352 = vpop.f32.mrf.mxu0
      %v353 = vadd.f32 0.0, %v352
      %v354 = vpop.f32.mrf.mxu0
      %v355 = vadd.f32 0.0, %v354
      %v356 = vpop.f32.mrf.mxu0
      %v357 = vpop.f32.mrf.mxu0
      %358 = vdwg.mxu0
      %362 = vrot.lane.b32.xlu0 %v287, 17
      %v363 = vpop.permute.xlu0 %362
      %364 = vrot.lane.b32.xlu0 %v288, 17
      %v365 = vpop.permute.xlu0 %364
      %366 = vrot.lane.b32.xlu0 %v289, 17
      %v367 = vpop.permute.xlu0 %366
      %vm368 = vcmask 138240
      %v369 = vsel %vm368, %v363, %v365
      %v370 = vsel %vm368, %v365, %v367
      %v372 = vsel %vm307, %v286, 0
      %v375 = vsel %vm311, %v369, 0
      %v378 = vsel %vm311, %v370, 0
      %380 = vmatprep.subr.bf16.mxu0 0
      %381 = vmatpush1.bf16.msra.mxu0 0
      %382 = vmatprep.subr.bf16.mxu0 0
      %383 = vmatpush1.bf16.msra.mxu0 0
      %384 = vmatprep.subr.bf16.mxu0 0
      %385 = vmatpush1.bf16.msra.mxu0 0
      %386 = vmatprep.subr.bf16.mxu0 0
      %387 = vmatpush1.bf16.msra.mxu0 0
      %388 = vmatprep.subr.bf16.mxu0 0
      %389 = vmatpush1.bf16.msra.mxu0 0
      %390 = vmatprep.subr.bf16.mxu0 0
      %391 = vmatpush1.bf16.msra.mxu0 0
      %392 = vmatprep.subr.bf16.mxu0 0
      %393 = vmatpush1.bf16.msra.mxu0 0
      %394 = vmatprep.subr.bf16.mxu0 %v378
      %395 = vmatpush1.bf16.msra.mxu0 %v375
      %396 = vmatprep.subr.bf16.mxu0 0
      %397 = vmatpush2.bf16.msra.mxu0 0
      %398 = vmatprep.subr.bf16.mxu0 0
      %399 = vmatpush2.bf16.msra.mxu0 0
      %400 = vmatprep.subr.bf16.mxu0 0
      %401 = vmatpush2.bf16.msra.mxu0 0
      %402 = vmatprep.subr.bf16.mxu0 0
      %403 = vmatpush2.bf16.msra.mxu0 0
      %404 = vmatprep.subr.bf16.mxu0 0
      %405 = vmatpush2.bf16.msra.mxu0 0
      %406 = vmatprep.subr.bf16.mxu0 0
      %407 = vmatpush2.bf16.msra.mxu0 0
      %408 = vmatprep.subr.bf16.mxu0 0
      %409 = vmatpush2.bf16.msra.mxu0 0
      %410 = vmatprep.subr.bf16.mxu0 0
      %411 = vmatpush2.bf16.msra.mxu0 0
      %412 = vmatprep.mubr.bf16.mxu0 0
      %413 = vmatmul.mubr.bf16.gmra.mxu0 %v372
      %v414 = vpop.f32.mrf.mxu0
      %v415 = vadd.f32 %v353, %v414
      %v416 = vpop.f32.mrf.mxu0
      %v417 = vadd.f32 %v355, %v416
      %v418 = vpop.f32.mrf.mxu0
      %v419 = vpop.f32.mrf.mxu0
      %420 = vdwg.mxu0
      %v422 = vlaneseq
      %v423 = vshrl.u32 %v422, 7
      %v424 = vsub.s32 0, %v423
      %v425 = vrot.slane %v255, %v424
      %v426 = vlaneseq
      %v427 = vshrl.u32 %v426, 7
      %v428 = vsub.s32 1, %v427
      %v429 = vrot.slane %v255, %v428
      %430 = vrot.lane.b32.xlu0 %v425, 113
      %v431 = vpop.permute.xlu0 %430
      %432 = vrot.lane.b32.xlu0 %v429, 113
      %v433 = vpop.permute.xlu0 %432
      %vm434 = vcmask 924672
      %v435 = vsel %vm434, %v431, %v433
      %v439 = vmul.f32 %v262, %v431
      %v440 = vmul.f32 %v263, %v435
      %v441 = vmul.f32 %v264, %v433
      %s442 = scalar_lea.vmem %s1, 8
      %v443 = vld [vmem:[%s442] sm:$0xf]
      %v444 = vpack.c.bf16 %v439, %v439
      %v445 = vpack.c.bf16 %v440, %v440
      %v446 = vpack.c.bf16 %v441, %v441
      %450 = vrot.lane.b32.xlu0 %v444, 15
      %v451 = vpop.permute.xlu0 %450
      %452 = vrot.lane.b32.xlu0 %v445, 15
      %v453 = vpop.permute.xlu0 %452
      %454 = vrot.lane.b32.xlu0 %v446, 15
      %v455 = vpop.permute.xlu0 %454
      %vm456 = vcmask 121856
      %v457 = vsel %vm456, %v451, %v453
      %v458 = vsel %vm456, %v453, %v455
      %v460 = vsel %vm307, %v443, 0
      %v463 = vsel %vm311, %v457, 0
      %v466 = vsel %vm311, %v458, 0
      %468 = vmatprep.subr.bf16.mxu0 0
      %469 = vmatpush1.bf16.msra.mxu0 0
      %470 = vmatprep.subr.bf16.mxu0 0
      %471 = vmatpush1.bf16.msra.mxu0 0
      %472 = vmatprep.subr.bf16.mxu0 0
      %473 = vmatpush1.bf16.msra.mxu0 0
      %474 = vmatprep.subr.bf16.mxu0 0
      %475 = vmatpush1.bf16.msra.mxu0 0
      %476 = vmatprep.subr.bf16.mxu0 0
      %477 = vmatpush1.bf16.msra.mxu0 0
      %478 = vmatprep.subr.bf16.mxu0 0
      %479 = vmatpush1.bf16.msra.mxu0 0
      %480 = vmatprep.subr.bf16.mxu0 0
      %481 = vmatpush1.bf16.msra.mxu0 0
      %482 = vmatprep.subr.bf16.mxu0 %v466
      %483 = vmatpush1.bf16.msra.mxu0 %v463
      %484 = vmatprep.subr.bf16.mxu0 0
      %485 = vmatpush2.bf16.msra.mxu0 0
      %486 = vmatprep.subr.bf16.mxu0 0
      %487 = vmatpush2.bf16.msra.mxu0 0
      %488 = vmatprep.subr.bf16.mxu0 0
      %489 = vmatpush2.bf16.msra.mxu0 0
      %490 = vmatprep.subr.bf16.mxu0 0
      %491 = vmatpush2.bf16.msra.mxu0 0
      %492 = vmatprep.subr.bf16.mxu0 0
      %493 = vmatpush2.bf16.msra.mxu0 0
      %494 = vmatprep.subr.bf16.mxu0 0
      %495 = vmatpush2.bf16.msra.mxu0 0
      %496 = vmatprep.subr.bf16.mxu0 0
      %497 = vmatpush2.bf16.msra.mxu0 0
      %498 = vmatprep.subr.bf16.mxu0 0
      %499 = vmatpush2.bf16.msra.mxu0 0
      %500 = vmatprep.mubr.bf16.mxu0 0
      %501 = vmatmul.mubr.bf16.gmra.mxu0 %v460
      %v502 = vpop.f32.mrf.mxu0
      %v503 = vadd.f32 0.0, %v502
      %v504 = vpop.f32.mrf.mxu0
      %v505 = vadd.f32 0.0, %v504
      %v506 = vpop.f32.mrf.mxu0
      %v507 = vpop.f32.mrf.mxu0
      %508 = vdwg.mxu0
      %v509 = vadd.f32 %v415, %v503
      %v510 = vadd.f32 %v417, %v505
      %511 = vrot.lane.b32.xlu0 %v269, 127
      %v512 = vpop.permute.xlu0 %511
      %513 = vrot.lane.b32.xlu0 %v273, 127
      %v514 = vpop.permute.xlu0 %513
      %vm515 = vcmask 1039360
      %v516 = vsel %vm515, %v512, %v514
      %v520 = vmul.f32 %v262, %v512
      %v521 = vmul.f32 %v263, %v516
      %v522 = vmul.f32 %v264, %v514
      %s523 = scalar_lea.vmem %s1, 12
      %v524 = vld [vmem:[%s523] sm:$0xf]
      %v525 = vpack.c.bf16 %v520, %v520
      %v526 = vpack.c.bf16 %v521, %v521
      %v527 = vpack.c.bf16 %v522, %v522
      %531 = vrot.lane.b32.xlu0 %v525, 1
      %v532 = vpop.permute.xlu0 %531
      %533 = vrot.lane.b32.xlu0 %v526, 1
      %v534 = vpop.permute.xlu0 %533
      %535 = vrot.lane.b32.xlu0 %v527, 1
      %v536 = vpop.permute.xlu0 %535
      %vm537 = vcmask 7168
      %v538 = vsel %vm537, %v532, %v534
      %v539 = vsel %vm537, %v534, %v536
      %v541 = vsel %vm307, %v524, 0
      %v544 = vsel %vm311, %v538, 0
      %v547 = vsel %vm311, %v539, 0
      %549 = vmatprep.subr.bf16.mxu0 0
      %550 = vmatpush1.bf16.msra.mxu0 0
      %551 = vmatprep.subr.bf16.mxu0 0
      %552 = vmatpush1.bf16.msra.mxu0 0
      %553 = vmatprep.subr.bf16.mxu0 0
      %554 = vmatpush1.bf16.msra.mxu0 0
      %555 = vmatprep.subr.bf16.mxu0 0
      %556 = vmatpush1.bf16.msra.mxu0 0
      %557 = vmatprep.subr.bf16.mxu0 0
      %558 = vmatpush1.bf16.msra.mxu0 0
      %559 = vmatprep.subr.bf16.mxu0 0
      %560 = vmatpush1.bf16.msra.mxu0 0
      %561 = vmatprep.subr.bf16.mxu0 0
      %562 = vmatpush1.bf16.msra.mxu0 0
      %563 = vmatprep.subr.bf16.mxu0 %v547
      %564 = vmatpush1.bf16.msra.mxu0 %v544
      %565 = vmatprep.subr.bf16.mxu0 0
      %566 = vmatpush2.bf16.msra.mxu0 0
      %567 = vmatprep.subr.bf16.mxu0 0
      %568 = vmatpush2.bf16.msra.mxu0 0
      %569 = vmatprep.subr.bf16.mxu0 0
      %570 = vmatpush2.bf16.msra.mxu0 0
      %571 = vmatprep.subr.bf16.mxu0 0
      %572 = vmatpush2.bf16.msra.mxu0 0
      %573 = vmatprep.subr.bf16.mxu0 0
      %574 = vmatpush2.bf16.msra.mxu0 0
      %575 = vmatprep.subr.bf16.mxu0 0
      %576 = vmatpush2.bf16.msra.mxu0 0
      %577 = vmatprep.subr.bf16.mxu0 0
      %578 = vmatpush2.bf16.msra.mxu0 0
      %579 = vmatprep.subr.bf16.mxu0 0
      %580 = vmatpush2.bf16.msra.mxu0 0
      %581 = vmatprep.mubr.bf16.mxu0 0
      %582 = vmatmul.mubr.bf16.gmra.mxu0 %v541
      %v583 = vpop.f32.mrf.mxu0
      %v584 = vadd.f32 0.0, %v583
      %v585 = vpop.f32.mrf.mxu0
      %v586 = vadd.f32 0.0, %v585
      %v587 = vpop.f32.mrf.mxu0
      %v588 = vpop.f32.mrf.mxu0
      %589 = vdwg.mxu0
      %v590 = vadd.f32 %v509, %v584
      %v591 = vadd.f32 %v510, %v586
      %s592 = scalar_lea.vmem %s1, 16
      %v593 = vld [vmem:[%s592] sm:$0xf]
      %v595 = vsel %vm307, %v593, 0
      %v598 = vsel %vm311, %v293, 0
      %v601 = vsel %vm311, %v294, 0
      %603 = vmatprep.subr.bf16.mxu0 0
      %604 = vmatpush1.bf16.msra.mxu0 0
      %605 = vmatprep.subr.bf16.mxu0 0
      %606 = vmatpush1.bf16.msra.mxu0 0
      %607 = vmatprep.subr.bf16.mxu0 0
      %608 = vmatpush1.bf16.msra.mxu0 0
      %609 = vmatprep.subr.bf16.mxu0 0
      %610 = vmatpush1.bf16.msra.mxu0 0
      %611 = vmatprep.subr.bf16.mxu0 0
      %612 = vmatpush1.bf16.msra.mxu0 0
      %613 = vmatprep.subr.bf16.mxu0 0
      %614 = vmatpush1.bf16.msra.mxu0 0
      %615 = vmatprep.subr.bf16.mxu0 0
      %616 = vmatpush1.bf16.msra.mxu0 0
      %617 = vmatprep.subr.bf16.mxu0 %v601
      %618 = vmatpush1.bf16.msra.mxu0 %v598
      %619 = vmatprep.subr.bf16.mxu0 0
      %620 = vmatpush2.bf16.msra.mxu0 0
      %621 = vmatprep.subr.bf16.mxu0 0
      %622 = vmatpush2.bf16.msra.mxu0 0
      %623 = vmatprep.subr.bf16.mxu0 0
      %624 = vmatpush2.bf16.msra.mxu0 0
      %625 = vmatprep.subr.bf16.mxu0 0
      %626 = vmatpush2.bf16.msra.mxu0 0
      %627 = vmatprep.subr.bf16.mxu0 0
      %628 = vmatpush2.bf16.msra.mxu0 0
      %629 = vmatprep.subr.bf16.mxu0 0
      %630 = vmatpush2.bf16.msra.mxu0 0
      %631 = vmatprep.subr.bf16.mxu0 0
      %632 = vmatpush2.bf16.msra.mxu0 0
      %633 = vmatprep.subr.bf16.mxu0 0
      %634 = vmatpush2.bf16.msra.mxu0 0
      %635 = vmatprep.mubr.bf16.mxu0 0
      %636 = vmatmul.mubr.bf16.gmra.mxu0 %v595
      %v637 = vpop.f32.mrf.mxu0
      %v638 = vadd.f32 0.0, %v637
      %v639 = vpop.f32.mrf.mxu0
      %v640 = vadd.f32 0.0, %v639
      %v641 = vpop.f32.mrf.mxu0
      %v642 = vpop.f32.mrf.mxu0
      %643 = vdwg.mxu0
      %v644 = vadd.f32 %v590, %v638
      %v645 = vadd.f32 %v591, %v640
      %v646 = vld [vmem:[#allocation2 + $0x8] sm:$0xff]
      %v647 = vld [vmem:[#allocation2 + $0x10] sm:$0xff]
      %v648 = vld [vmem:[#allocation2 + $0x18] sm:$0xff]
      %649 = vrot.lane.b32.xlu0 %v425, 1
      %v650 = vpop.permute.xlu0 %649
      %651 = vrot.lane.b32.xlu0 %v429, 1
      %v652 = vpop.permute.xlu0 %651
      %vm653 = vcmask 7168
      %v654 = vsel %vm653, %v650, %v652
      %v658 = vmul.f32 %v646, %v650
      %v659 = vmul.f32 %v647, %v654
      %v660 = vmul.f32 %v648, %v652
      %s661 = scalar_lea.vmem %s1, 20
      %v662 = vld [vmem:[%s661] sm:$0xf]
      %v663 = vpack.c.bf16 %v658, %v658
      %v664 = vpack.c.bf16 %v659, %v659
      %v665 = vpack.c.bf16 %v660, %v660
      %669 = vrot.lane.b32.xlu0 %v663, 127
      %v670 = vpop.permute.xlu0 %669
      %671 = vrot.lane.b32.xlu0 %v664, 127
      %v672 = vpop.permute.xlu0 %671
      %673 = vrot.lane.b32.xlu0 %v665, 127
      %v674 = vpop.permute.xlu0 %673
      %vm675 = vcmask 1039360
      %v676 = vsel %vm675, %v670, %v672
      %v677 = vsel %vm675, %v672, %v674
      %v679 = vsel %vm307, %v662, 0
      %v682 = vsel %vm311, %v676, 0
      %v685 = vsel %vm311, %v677, 0
      %687 = vmatprep.subr.bf16.mxu0 0
      %688 = vmatpush1.bf16.msra.mxu0 0
      %689 = vmatprep.subr.bf16.mxu0 0
      %690 = vmatpush1.bf16.msra.mxu0 0
      %691 = vmatprep.subr.bf16.mxu0 0
      %692 = vmatpush1.bf16.msra.mxu0 0
      %693 = vmatprep.subr.bf16.mxu0 0
      %694 = vmatpush1.bf16.msra.mxu0 0
      %695 = vmatprep.subr.bf16.mxu0 0
      %696 = vmatpush1.bf16.msra.mxu0 0
      %697 = vmatprep.subr.bf16.mxu0 0
      %698 = vmatpush1.bf16.msra.mxu0 0
      %699 = vmatprep.subr.bf16.mxu0 0
      %700 = vmatpush1.bf16.msra.mxu0 0
      %701 = vmatprep.subr.bf16.mxu0 %v685
      %702 = vmatpush1.bf16.msra.mxu0 %v682
      %703 = vmatprep.subr.bf16.mxu0 0
      %704 = vmatpush2.bf16.msra.mxu0 0
      %705 = vmatprep.subr.bf16.mxu0 0
      %706 = vmatpush2.bf16.msra.mxu0 0
      %707 = vmatprep.subr.bf16.mxu0 0
      %708 = vmatpush2.bf16.msra.mxu0 0
      %709 = vmatprep.subr.bf16.mxu0 0
      %710 = vmatpush2.bf16.msra.mxu0 0
      %711 = vmatprep.subr.bf16.mxu0 0
      %712 = vmatpush2.bf16.msra.mxu0 0
      %713 = vmatprep.subr.bf16.mxu0 0
      %714 = vmatpush2.bf16.msra.mxu0 0
      %715 = vmatprep.subr.bf16.mxu0 0
      %716 = vmatpush2.bf16.msra.mxu0 0
      %717 = vmatprep.subr.bf16.mxu0 0
      %718 = vmatpush2.bf16.msra.mxu0 0
      %719 = vmatprep.mubr.bf16.mxu0 0
      %720 = vmatmul.mubr.bf16.gmra.mxu0 %v679
      %v721 = vpop.f32.mrf.mxu0
      %v722 = vadd.f32 0.0, %v721
      %v723 = vpop.f32.mrf.mxu0
      %v724 = vadd.f32 0.0, %v723
      %v725 = vpop.f32.mrf.mxu0
      %v726 = vpop.f32.mrf.mxu0
      %727 = vdwg.mxu0
      %v728 = vadd.f32 %v644, %v722
      %v729 = vadd.f32 %v645, %v724
      %730 = vrot.lane.b32.xlu0 %v269, 15
      %v731 = vpop.permute.xlu0 %730
      %732 = vrot.lane.b32.xlu0 %v273, 15
      %v733 = vpop.permute.xlu0 %732
      %vm734 = vcmask 121856
      %v735 = vsel %vm734, %v731, %v733
      %v739 = vmul.f32 %v646, %v731
      %v740 = vmul.f32 %v647, %v735
      %v741 = vmul.f32 %v648, %v733
      %s742 = scalar_lea.vmem %s1, 24
      %v743 = vld [vmem:[%s742] sm:$0xf]
      %v744 = vpack.c.bf16 %v739, %v739
      %v745 = vpack.c.bf16 %v740, %v740
      %v746 = vpack.c.bf16 %v741, %v741
      %750 = vrot.lane.b32.xlu0 %v744, 113
      %v751 = vpop.permute.xlu0 %750
      %752 = vrot.lane.b32.xlu0 %v745, 113
      %v753 = vpop.permute.xlu0 %752
      %754 = vrot.lane.b32.xlu0 %v746, 113
      %v755 = vpop.permute.xlu0 %754
      %vm756 = vcmask 924672
      %v757 = vsel %vm756, %v751, %v753
      %v758 = vsel %vm756, %v753, %v755
      %v760 = vsel %vm307, %v743, 0
      %v763 = vsel %vm311, %v757, 0
      %v766 = vsel %vm311, %v758, 0
      %768 = vmatprep.subr.bf16.mxu0 0
      %769 = vmatpush1.bf16.msra.mxu0 0
      %770 = vmatprep.subr.bf16.mxu0 0
      %771 = vmatpush1.bf16.msra.mxu0 0
      %772 = vmatprep.subr.bf16.mxu0 0
      %773 = vmatpush1.bf16.msra.mxu0 0
      %774 = vmatprep.subr.bf16.mxu0 0
      %775 = vmatpush1.bf16.msra.mxu0 0
      %776 = vmatprep.subr.bf16.mxu0 0
      %777 = vmatpush1.bf16.msra.mxu0 0
      %778 = vmatprep.subr.bf16.mxu0 0
      %779 = vmatpush1.bf16.msra.mxu0 0
      %780 = vmatprep.subr.bf16.mxu0 0
      %781 = vmatpush1.bf16.msra.mxu0 0
      %782 = vmatprep.subr.bf16.mxu0 %v766
      %783 = vmatpush1.bf16.msra.mxu0 %v763
      %784 = vmatprep.subr.bf16.mxu0 0
      %785 = vmatpush2.bf16.msra.mxu0 0
      %786 = vmatprep.subr.bf16.mxu0 0
      %787 = vmatpush2.bf16.msra.mxu0 0
      %788 = vmatprep.subr.bf16.mxu0 0
      %789 = vmatpush2.bf16.msra.mxu0 0
      %790 = vmatprep.subr.bf16.mxu0 0
      %791 = vmatpush2.bf16.msra.mxu0 0
      %792 = vmatprep.subr.bf16.mxu0 0
      %793 = vmatpush2.bf16.msra.mxu0 0
      %794 = vmatprep.subr.bf16.mxu0 0
      %795 = vmatpush2.bf16.msra.mxu0 0
      %796 = vmatprep.subr.bf16.mxu0 0
      %797 = vmatpush2.bf16.msra.mxu0 0
      %798 = vmatprep.subr.bf16.mxu0 0
      %799 = vmatpush2.bf16.msra.mxu0 0
      %800 = vmatprep.mubr.bf16.mxu0 0
      %801 = vmatmul.mubr.bf16.gmra.mxu0 %v760
      %v802 = vpop.f32.mrf.mxu0
      %v803 = vadd.f32 0.0, %v802
      %v804 = vpop.f32.mrf.mxu0
      %v805 = vadd.f32 0.0, %v804
      %v806 = vpop.f32.mrf.mxu0
      %v807 = vpop.f32.mrf.mxu0
      %808 = vdwg.mxu0
      %v809 = vadd.f32 %v728, %v803
      %v810 = vadd.f32 %v729, %v805
      %s811 = scalar_lea.vmem %s1, 28
      %v812 = vld [vmem:[%s811] sm:$0xf]
      %v813 = vpack.c.bf16 %v646, %v646
      %v814 = vpack.c.bf16 %v647, %v647
      %v815 = vpack.c.bf16 %v648, %v648
      %819 = vrot.lane.b32.xlu0 %v813, 112
      %v820 = vpop.permute.xlu0 %819
      %821 = vrot.lane.b32.xlu0 %v814, 112
      %v822 = vpop.permute.xlu0 %821
      %823 = vrot.lane.b32.xlu0 %v815, 112
      %v824 = vpop.permute.xlu0 %823
      %vm825 = vcmask 916480
      %v826 = vsel %vm825, %v820, %v822
      %v827 = vsel %vm825, %v822, %v824
      %v829 = vsel %vm307, %v812, 0
      %v832 = vsel %vm311, %v826, 0
      %v835 = vsel %vm311, %v827, 0
      %837 = vmatprep.subr.bf16.mxu0 0
      %838 = vmatpush1.bf16.msra.mxu0 0
      %839 = vmatprep.subr.bf16.mxu0 0
      %840 = vmatpush1.bf16.msra.mxu0 0
      %841 = vmatprep.subr.bf16.mxu0 0
      %842 = vmatpush1.bf16.msra.mxu0 0
      %843 = vmatprep.subr.bf16.mxu0 0
      %844 = vmatpush1.bf16.msra.mxu0 0
      %845 = vmatprep.subr.bf16.mxu0 0
      %846 = vmatpush1.bf16.msra.mxu0 0
      %847 = vmatprep.subr.bf16.mxu0 0
      %848 = vmatpush1.bf16.msra.mxu0 0
      %849 = vmatprep.subr.bf16.mxu0 0
      %850 = vmatpush1.bf16.msra.mxu0 0
      %851 = vmatprep.subr.bf16.mxu0 %v835
      %852 = vmatpush1.bf16.msra.mxu0 %v832
      %853 = vmatprep.subr.bf16.mxu0 0
      %854 = vmatpush2.bf16.msra.mxu0 0
      %855 = vmatprep.subr.bf16.mxu0 0
      %856 = vmatpush2.bf16.msra.mxu0 0
      %857 = vmatprep.subr.bf16.mxu0 0
      %858 = vmatpush2.bf16.msra.mxu0 0
      %859 = vmatprep.subr.bf16.mxu0 0
      %860 = vmatpush2.bf16.msra.mxu0 0
      %861 = vmatprep.subr.bf16.mxu0 0
      %862 = vmatpush2.bf16.msra.mxu0 0
      %863 = vmatprep.subr.bf16.mxu0 0
      %864 = vmatpush2.bf16.msra.mxu0 0
      %865 = vmatprep.subr.bf16.mxu0 0
      %866 = vmatpush2.bf16.msra.mxu0 0
      %867 = vmatprep.subr.bf16.mxu0 0
      %868 = vmatpush2.bf16.msra.mxu0 0
      %869 = vmatprep.mubr.bf16.mxu0 0
      %870 = vmatmul.mubr.bf16.gmra.mxu0 %v829
      %v871 = vpop.f32.mrf.mxu0
      %v872 = vadd.f32 0.0, %v871
      %v873 = vpop.f32.mrf.mxu0
      %v874 = vadd.f32 0.0, %v873
      %v875 = vpop.f32.mrf.mxu0
      %v876 = vpop.f32.mrf.mxu0
      %877 = vdwg.mxu0
      %v878 = vadd.f32 %v809, %v872
      %v879 = vadd.f32 %v810, %v874
      %880 = vrot.lane.b32.xlu0 %v425, 17
      %v881 = vpop.permute.xlu0 %880
      %882 = vrot.lane.b32.xlu0 %v429, 17
      %v883 = vpop.permute.xlu0 %882
      %vm884 = vcmask 138240
      %v885 = vsel %vm884, %v881, %v883
      %v889 = vmul.f32 %v646, %v881
      %v890 = vmul.f32 %v647, %v885
      %v891 = vmul.f32 %v648, %v883
      %s892 = scalar_lea.vmem %s1, 32
      %v893 = vld [vmem:[%s892] sm:$0xf]
      %v894 = vpack.c.bf16 %v889, %v889
      %v895 = vpack.c.bf16 %v890, %v890
      %v896 = vpack.c.bf16 %v891, %v891
      %900 = vrot.lane.b32.xlu0 %v894, 111
      %v901 = vpop.permute.xlu0 %900
      %902 = vrot.lane.b32.xlu0 %v895, 111
      %v903 = vpop.permute.xlu0 %902
      %904 = vrot.lane.b32.xlu0 %v896, 111
      %v905 = vpop.permute.xlu0 %904
      %vm906 = vcmask 908288
      %v907 = vsel %vm906, %v901, %v903
      %v908 = vsel %vm906, %v903, %v905
      %v910 = vsel %vm307, %v893, 0
      %v913 = vsel %vm311, %v907, 0
      %v916 = vsel %vm311, %v908, 0
      %918 = vmatprep.subr.bf16.mxu0 0
      %919 = vmatpush1.bf16.msra.mxu0 0
      %920 = vmatprep.subr.bf16.mxu0 0
      %921 = vmatpush1.bf16.msra.mxu0 0
      %922 = vmatprep.subr.bf16.mxu0 0
      %923 = vmatpush1.bf16.msra.mxu0 0
      %924 = vmatprep.subr.bf16.mxu0 0
      %925 = vmatpush1.bf16.msra.mxu0 0
      %926 = vmatprep.subr.bf16.mxu0 0
      %927 = vmatpush1.bf16.msra.mxu0 0
      %928 = vmatprep.subr.bf16.mxu0 0
      %929 = vmatpush1.bf16.msra.mxu0 0
      %930 = vmatprep.subr.bf16.mxu0 0
      %931 = vmatpush1.bf16.msra.mxu0 0
      %932 = vmatprep.subr.bf16.mxu0 %v916
      %933 = vmatpush1.bf16.msra.mxu0 %v913
      %934 = vmatprep.subr.bf16.mxu0 0
      %935 = vmatpush2.bf16.msra.mxu0 0
      %936 = vmatprep.subr.bf16.mxu0 0
      %937 = vmatpush2.bf16.msra.mxu0 0
      %938 = vmatprep.subr.bf16.mxu0 0
      %939 = vmatpush2.bf16.msra.mxu0 0
      %940 = vmatprep.subr.bf16.mxu0 0
      %941 = vmatpush2.bf16.msra.mxu0 0
      %942 = vmatprep.subr.bf16.mxu0 0
      %943 = vmatpush2.bf16.msra.mxu0 0
      %944 = vmatprep.subr.bf16.mxu0 0
      %945 = vmatpush2.bf16.msra.mxu0 0
      %946 = vmatprep.subr.bf16.mxu0 0
      %947 = vmatpush2.bf16.msra.mxu0 0
      %948 = vmatprep.subr.bf16.mxu0 0
      %949 = vmatpush2.bf16.msra.mxu0 0
      %950 = vmatprep.mubr.bf16.mxu0 0
      %951 = vmatmul.mubr.bf16.gmra.mxu0 %v910
      %v952 = vpop.f32.mrf.mxu0
      %v953 = vadd.f32 0.0, %v952
      %v954 = vpop.f32.mrf.mxu0
      %v955 = vadd.f32 0.0, %v954
      %v956 = vpop.f32.mrf.mxu0
      %v957 = vpop.f32.mrf.mxu0
      %958 = vdwg.mxu0
      %v959 = vadd.f32 %v878, %v953
      %v960 = vadd.f32 %v879, %v955
      %v961 = vld [vmem:[%s2] sm:$0xff]
      %963 = vset.pattern.permute.xlu0 0
      %964 = vperm.xlu0 %963, %v961
      %v965 = vpop.permute.xlu0 %964
      %v967 = vadd.f32 %v959, %v965
      %v968 = vadd.f32 %v960, %v965
      %v969 = vmul.f32 %v967, 0.2
      %v970 = vmul.f32 %v968, 0.2
      %v971 = vmax.f32 %v967, %v969
      %v972 = vmax.f32 %v968, %v970
      %973 = vst [vmem:[#allocation2 + $0x8] sm:$0xff] %v971
      %974 = vst [vmem:[#allocation2 + $0x10] sm:$0xff] %v972
      %v975 = vld [vmem:[#allocation2] sm:$0xff]
      %v976 = vld [vmem:[#allocation2 + $0x8] sm:$0xff]
      %v977 = vld [vmem:[#allocation2 + $0x10] sm:$0xff]
      %v978 = vmul.f32 %v975, %v275
      %v979 = vmul.f32 %v976, %v279
      %v980 = vmul.f32 %v977, %v277
      %v981 = vld [vmem:[%s3] sm:$0xf]
      %v982 = vpack.c.bf16 %v978, %v978
      %v983 = vpack.c.bf16 %v979, %v979
      %v984 = vpack.c.bf16 %v980, %v980
      %s985 = scalar_lea.vmem %s3, 4
      %v986 = vld [vmem:[%s985] sm:$0xf]
      %v987 = vpack.c.bf16 %v975, %v975
      %v988 = vpack.c.bf16 %v976, %v976
      %v989 = vpack.c.bf16 %v977, %v977
      %993 = vrot.lane.b32.xlu0 %v987, 16
      %v994 = vpop.permute.xlu0 %993
      %995 = vrot.lane.b32.xlu0 %v988, 16
      %v996 = vpop.permute.xlu0 %995
      %997 = vrot.lane.b32.xlu0 %v989, 16
      %v998 = vpop.permute.xlu0 %997
      %v999 = vsel %vm304, %v994, %v996
      %v1000 = vsel %vm304, %v996, %v998
      %v1002 = vsel %vm307, %v986, 0
      %v1005 = vsel %vm311, %v999, 0
      %v1008 = vsel %vm311, %v1000, 0
      %1010 = vmatprep.subr.bf16.mxu0 0
      %1011 = vmatpush1.bf16.msra.mxu0 0
      %1012 = vmatprep.subr.bf16.mxu0 0
      %1013 = vmatpush1.bf16.msra.mxu0 0
      %1014 = vmatprep.subr.bf16.mxu0 0
      %1015 = vmatpush1.bf16.msra.mxu0 0
      %1016 = vmatprep.subr.bf16.mxu0 0
      %1017 = vmatpush1.bf16.msra.mxu0 0
      %1018 = vmatprep.subr.bf16.mxu0 0
      %1019 = vmatpush1.bf16.msra.mxu0 0
      %1020 = vmatprep.subr.bf16.mxu0 0
      %1021 = vmatpush1.bf16.msra.mxu0 0
      %1022 = vmatprep.subr.bf16.mxu0 0
      %1023 = vmatpush1.bf16.msra.mxu0 0
      %1024 = vmatprep.subr.bf16.mxu0 %v1008
      %1025 = vmatpush1.bf16.msra.mxu0 %v1005
      %1026 = vmatprep.subr.bf16.mxu0 0
      %1027 = vmatpush2.bf16.msra.mxu0 0
      %1028 = vmatprep.subr.bf16.mxu0 0
      %1029 = vmatpush2.bf16.msra.mxu0 0
      %1030 = vmatprep.subr.bf16.mxu0 0
      %1031 = vmatpush2.bf16.msra.mxu0 0
      %1032 = vmatprep.subr.bf16.mxu0 0
      %1033 = vmatpush2.bf16.msra.mxu0 0
      %1034 = vmatprep.subr.bf16.mxu0 0
      %1035 = vmatpush2.bf16.msra.mxu0 0
      %1036 = vmatprep.subr.bf16.mxu0 0
      %1037 = vmatpush2.bf16.msra.mxu0 0
      %1038 = vmatprep.subr.bf16.mxu0 0
      %1039 = vmatpush2.bf16.msra.mxu0 0
      %1040 = vmatprep.subr.bf16.mxu0 0
      %1041 = vmatpush2.bf16.msra.mxu0 0
      %1042 = vmatprep.mubr.bf16.mxu0 0
      %1043 = vmatmul.mubr.bf16.gmra.mxu0 %v1002
      %v1044 = vpop.f32.mrf.mxu0
      %v1045 = vadd.f32 0.0, %v1044
      %v1046 = vpop.f32.mrf.mxu0
      %v1047 = vadd.f32 0.0, %v1046
      %v1048 = vpop.f32.mrf.mxu0
      %v1049 = vpop.f32.mrf.mxu0
      %1050 = vdwg.mxu0
      %1054 = vrot.lane.b32.xlu0 %v982, 17
      %v1055 = vpop.permute.xlu0 %1054
      %1056 = vrot.lane.b32.xlu0 %v983, 17
      %v1057 = vpop.permute.xlu0 %1056
      %1058 = vrot.lane.b32.xlu0 %v984, 17
      %v1059 = vpop.permute.xlu0 %1058
      %v1060 = vsel %vm368, %v1055, %v1057
      %v1061 = vsel %vm368, %v1057, %v1059
      %v1063 = vsel %vm307, %v981, 0
      %v1066 = vsel %vm311, %v1060, 0
      %v1069 = vsel %vm311, %v1061, 0
      %1071 = vmatprep.subr.bf16.mxu0 0
      %1072 = vmatpush1.bf16.msra.mxu0 0
      %1073 = vmatprep.subr.bf16.mxu0 0
      %1074 = vmatpush1.bf16.msra.mxu0 0
      %1075 = vmatprep.subr.bf16.mxu0 0
      %1076 = vmatpush1.bf16.msra.mxu0 0
      %1077 = vmatprep.subr.bf16.mxu0 0
      %1078 = vmatpush1.bf16.msra.mxu0 0
      %1079 = vmatprep.subr.bf16.mxu0 0
      %1080 = vmatpush1.bf16.msra.mxu0 0
      %1081 = vmatprep.subr.bf16.mxu0 0
      %1082 = vmatpush1.bf16.msra.mxu0 0
      %1083 = vmatprep.subr.bf16.mxu0 0
      %1084 = vmatpush1.bf16.msra.mxu0 0
      %1085 = vmatprep.subr.bf16.mxu0 %v1069
      %1086 = vmatpush1.bf16.msra.mxu0 %v1066
      %1087 = vmatprep.subr.bf16.mxu0 0
      %1088 = vmatpush2.bf16.msra.mxu0 0
      %1089 = vmatprep.subr.bf16.mxu0 0
      %1090 = vmatpush2.bf16.msra.mxu0 0
      %1091 = vmatprep.subr.bf16.mxu0 0
      %1092 = vmatpush2.bf16.msra.mxu0 0
      %1093 = vmatprep.subr.bf16.mxu0 0
      %1094 = vmatpush2.bf16.msra.mxu0 0
      %1095 = vmatprep.subr.bf16.mxu0 0
      %1096 = vmatpush2.bf16.msra.mxu0 0
      %1097 = vmatprep.subr.bf16.mxu0 0
      %1098 = vmatpush2.bf16.msra.mxu0 0
      %1099 = vmatprep.subr.bf16.mxu0 0
      %1100 = vmatpush2.bf16.msra.mxu0 0
      %1101 = vmatprep.subr.bf16.mxu0 0
      %1102 = vmatpush2.bf16.msra.mxu0 0
      %1103 = vmatprep.mubr.bf16.mxu0 0
      %1104 = vmatmul.mubr.bf16.gmra.mxu0 %v1063
      %v1105 = vpop.f32.mrf.mxu0
      %v1106 = vadd.f32 %v1045, %v1105
      %v1107 = vpop.f32.mrf.mxu0
      %v1108 = vadd.f32 %v1047, %v1107
      %v1109 = vpop.f32.mrf.mxu0
      %v1110 = vpop.f32.mrf.mxu0
      %1111 = vdwg.mxu0
      %v1112 = vmul.f32 %v975, %v431
      %v1113 = vmul.f32 %v976, %v435
      %v1114 = vmul.f32 %v977, %v433
      %s1115 = scalar_lea.vmem %s3, 8
      %v1116 = vld [vmem:[%s1115] sm:$0xf]
      %v1117 = vpack.c.bf16 %v1112, %v1112
      %v1118 = vpack.c.bf16 %v1113, %v1113
      %v1119 = vpack.c.bf16 %v1114, %v1114
      %1123 = vrot.lane.b32.xlu0 %v1117, 15
      %v1124 = vpop.permute.xlu0 %1123
      %1125 = vrot.lane.b32.xlu0 %v1118, 15
      %v1126 = vpop.permute.xlu0 %1125
      %1127 = vrot.lane.b32.xlu0 %v1119, 15
      %v1128 = vpop.permute.xlu0 %1127
      %v1129 = vsel %vm456, %v1124, %v1126
      %v1130 = vsel %vm456, %v1126, %v1128
      %v1132 = vsel %vm307, %v1116, 0
      %v1135 = vsel %vm311, %v1129, 0
      %v1138 = vsel %vm311, %v1130, 0
      %1140 = vmatprep.subr.bf16.mxu0 0
      %1141 = vmatpush1.bf16.msra.mxu0 0
      %1142 = vmatprep.subr.bf16.mxu0 0
      %1143 = vmatpush1.bf16.msra.mxu0 0
      %1144 = vmatprep.subr.bf16.mxu0 0
      %1145 = vmatpush1.bf16.msra.mxu0 0
      %1146 = vmatprep.subr.bf16.mxu0 0
      %1147 = vmatpush1.bf16.msra.mxu0 0
      %1148 = vmatprep.subr.bf16.mxu0 0
      %1149 = vmatpush1.bf16.msra.mxu0 0
      %1150 = vmatprep.subr.bf16.mxu0 0
      %1151 = vmatpush1.bf16.msra.mxu0 0
      %1152 = vmatprep.subr.bf16.mxu0 0
      %1153 = vmatpush1.bf16.msra.mxu0 0
      %1154 = vmatprep.subr.bf16.mxu0 %v1138
      %1155 = vmatpush1.bf16.msra.mxu0 %v1135
      %1156 = vmatprep.subr.bf16.mxu0 0
      %1157 = vmatpush2.bf16.msra.mxu0 0
      %1158 = vmatprep.subr.bf16.mxu0 0
      %1159 = vmatpush2.bf16.msra.mxu0 0
      %1160 = vmatprep.subr.bf16.mxu0 0
      %1161 = vmatpush2.bf16.msra.mxu0 0
      %1162 = vmatprep.subr.bf16.mxu0 0
      %1163 = vmatpush2.bf16.msra.mxu0 0
      %1164 = vmatprep.subr.bf16.mxu0 0
      %1165 = vmatpush2.bf16.msra.mxu0 0
      %1166 = vmatprep.subr.bf16.mxu0 0
      %1167 = vmatpush2.bf16.msra.mxu0 0
      %1168 = vmatprep.subr.bf16.mxu0 0
      %1169 = vmatpush2.bf16.msra.mxu0 0
      %1170 = vmatprep.subr.bf16.mxu0 0
      %1171 = vmatpush2.bf16.msra.mxu0 0
      %1172 = vmatprep.mubr.bf16.mxu0 0
      %1173 = vmatmul.mubr.bf16.gmra.mxu0 %v1132
      %v1174 = vpop.f32.mrf.mxu0
      %v1175 = vadd.f32 0.0, %v1174
      %v1176 = vpop.f32.mrf.mxu0
      %v1177 = vadd.f32 0.0, %v1176
      %v1178 = vpop.f32.mrf.mxu0
      %v1179 = vpop.f32.mrf.mxu0
      %1180 = vdwg.mxu0
      %v1181 = vadd.f32 %v1106, %v1175
      %v1182 = vadd.f32 %v1108, %v1177
      %v1183 = vmul.f32 %v975, %v512
      %v1184 = vmul.f32 %v976, %v516
      %v1185 = vmul.f32 %v977, %v514
      %s1186 = scalar_lea.vmem %s3, 12
      %v1187 = vld [vmem:[%s1186] sm:$0xf]
      %v1188 = vpack.c.bf16 %v1183, %v1183
      %v1189 = vpack.c.bf16 %v1184, %v1184
      %v1190 = vpack.c.bf16 %v1185, %v1185
      %1194 = vrot.lane.b32.xlu0 %v1188, 1
      %v1195 = vpop.permute.xlu0 %1194
      %1196 = vrot.lane.b32.xlu0 %v1189, 1
      %v1197 = vpop.permute.xlu0 %1196
      %1198 = vrot.lane.b32.xlu0 %v1190, 1
      %v1199 = vpop.permute.xlu0 %1198
      %v1200 = vsel %vm537, %v1195, %v1197
      %v1201 = vsel %vm537, %v1197, %v1199
      %v1203 = vsel %vm307, %v1187, 0
      %v1206 = vsel %vm311, %v1200, 0
      %v1209 = vsel %vm311, %v1201, 0
      %1211 = vmatprep.subr.bf16.mxu0 0
      %1212 = vmatpush1.bf16.msra.mxu0 0
      %1213 = vmatprep.subr.bf16.mxu0 0
      %1214 = vmatpush1.bf16.msra.mxu0 0
      %1215 = vmatprep.subr.bf16.mxu0 0
      %1216 = vmatpush1.bf16.msra.mxu0 0
      %1217 = vmatprep.subr.bf16.mxu0 0
      %1218 = vmatpush1.bf16.msra.mxu0 0
      %1219 = vmatprep.subr.bf16.mxu0 0
      %1220 = vmatpush1.bf16.msra.mxu0 0
      %1221 = vmatprep.subr.bf16.mxu0 0
      %1222 = vmatpush1.bf16.msra.mxu0 0
      %1223 = vmatprep.subr.bf16.mxu0 0
      %1224 = vmatpush1.bf16.msra.mxu0 0
      %1225 = vmatprep.subr.bf16.mxu0 %v1209
      %1226 = vmatpush1.bf16.msra.mxu0 %v1206
      %1227 = vmatprep.subr.bf16.mxu0 0
      %1228 = vmatpush2.bf16.msra.mxu0 0
      %1229 = vmatprep.subr.bf16.mxu0 0
      %1230 = vmatpush2.bf16.msra.mxu0 0
      %1231 = vmatprep.subr.bf16.mxu0 0
      %1232 = vmatpush2.bf16.msra.mxu0 0
      %1233 = vmatprep.subr.bf16.mxu0 0
      %1234 = vmatpush2.bf16.msra.mxu0 0
      %1235 = vmatprep.subr.bf16.mxu0 0
      %1236 = vmatpush2.bf16.msra.mxu0 0
      %1237 = vmatprep.subr.bf16.mxu0 0
      %1238 = vmatpush2.bf16.msra.mxu0 0
      %1239 = vmatprep.subr.bf16.mxu0 0
      %1240 = vmatpush2.bf16.msra.mxu0 0
      %1241 = vmatprep.subr.bf16.mxu0 0
      %1242 = vmatpush2.bf16.msra.mxu0 0
      %1243 = vmatprep.mubr.bf16.mxu0 0
      %1244 = vmatmul.mubr.bf16.gmra.mxu0 %v1203
      %v1245 = vpop.f32.mrf.mxu0
      %v1246 = vadd.f32 0.0, %v1245
      %v1247 = vpop.f32.mrf.mxu0
      %v1248 = vadd.f32 0.0, %v1247
      %v1249 = vpop.f32.mrf.mxu0
      %v1250 = vpop.f32.mrf.mxu0
      %1251 = vdwg.mxu0
      %v1252 = vadd.f32 %v1181, %v1246
      %v1253 = vadd.f32 %v1182, %v1248
      %s1254 = scalar_lea.vmem %s3, 16
      %v1255 = vld [vmem:[%s1254] sm:$0xf]
      %v1257 = vsel %vm307, %v1255, 0
      %v1260 = vsel %vm311, %v988, 0
      %v1263 = vsel %vm311, %v989, 0
      %1265 = vmatprep.subr.bf16.mxu0 0
      %1266 = vmatpush1.bf16.msra.mxu0 0
      %1267 = vmatprep.subr.bf16.mxu0 0
      %1268 = vmatpush1.bf16.msra.mxu0 0
      %1269 = vmatprep.subr.bf16.mxu0 0
      %1270 = vmatpush1.bf16.msra.mxu0 0
      %1271 = vmatprep.subr.bf16.mxu0 0
      %1272 = vmatpush1.bf16.msra.mxu0 0
      %1273 = vmatprep.subr.bf16.mxu0 0
      %1274 = vmatpush1.bf16.msra.mxu0 0
      %1275 = vmatprep.subr.bf16.mxu0 0
      %1276 = vmatpush1.bf16.msra.mxu0 0
      %1277 = vmatprep.subr.bf16.mxu0 0
      %1278 = vmatpush1.bf16.msra.mxu0 0
      %1279 = vmatprep.subr.bf16.mxu0 %v1263
      %1280 = vmatpush1.bf16.msra.mxu0 %v1260
      %1281 = vmatprep.subr.bf16.mxu0 0
      %1282 = vmatpush2.bf16.msra.mxu0 0
      %1283 = vmatprep.subr.bf16.mxu0 0
      %1284 = vmatpush2.bf16.msra.mxu0 0
      %1285 = vmatprep.subr.bf16.mxu0 0
      %1286 = vmatpush2.bf16.msra.mxu0 0
      %1287 = vmatprep.subr.bf16.mxu0 0
      %1288 = vmatpush2.bf16.msra.mxu0 0
      %1289 = vmatprep.subr.bf16.mxu0 0
      %1290 = vmatpush2.bf16.msra.mxu0 0
      %1291 = vmatprep.subr.bf16.mxu0 0
      %1292 = vmatpush2.bf16.msra.mxu0 0
      %1293 = vmatprep.subr.bf16.mxu0 0
      %1294 = vmatpush2.bf16.msra.mxu0 0
      %1295 = vmatprep.subr.bf16.mxu0 0
      %1296 = vmatpush2.bf16.msra.mxu0 0
      %1297 = vmatprep.mubr.bf16.mxu0 0
      %1298 = vmatmul.mubr.bf16.gmra.mxu0 %v1257
      %v1299 = vpop.f32.mrf.mxu0
      %v1300 = vadd.f32 0.0, %v1299
      %v1301 = vpop.f32.mrf.mxu0
      %v1302 = vadd.f32 0.0, %v1301
      %v1303 = vpop.f32.mrf.mxu0
      %v1304 = vpop.f32.mrf.mxu0
      %1305 = vdwg.mxu0
      %v1306 = vadd.f32 %v1252, %v1300
      %v1307 = vadd.f32 %v1253, %v1302
      %v1308 = vld [vmem:[#allocation2 + $0x8] sm:$0xff]
      %v1309 = vld [vmem:[#allocation2 + $0x10] sm:$0xff]
      %v1310 = vld [vmem:[#allocation2 + $0x18] sm:$0xff]
      %v1311 = vmul.f32 %v1308, %v650
      %v1312 = vmul.f32 %v1309, %v654
      %v1313 = vmul.f32 %v1310, %v652
      %s1314 = scalar_lea.vmem %s3, 20
      %v1315 = vld [vmem:[%s1314] sm:$0xf]
      %v1316 = vpack.c.bf16 %v1311, %v1311
      %v1317 = vpack.c.bf16 %v1312, %v1312
      %v1318 = vpack.c.bf16 %v1313, %v1313
      %1322 = vrot.lane.b32.xlu0 %v1316, 127
      %v1323 = vpop.permute.xlu0 %1322
      %1324 = vrot.lane.b32.xlu0 %v1317, 127
      %v1325 = vpop.permute.xlu0 %1324
      %1326 = vrot.lane.b32.xlu0 %v1318, 127
      %v1327 = vpop.permute.xlu0 %1326
      %v1328 = vsel %vm675, %v1323, %v1325
      %v1329 = vsel %vm675, %v1325, %v1327
      %v1331 = vsel %vm307, %v1315, 0
      %v1334 = vsel %vm311, %v1328, 0
      %v1337 = vsel %vm311, %v1329, 0
      %1339 = vmatprep.subr.bf16.mxu0 0
      %1340 = vmatpush1.bf16.msra.mxu0 0
      %1341 = vmatprep.subr.bf16.mxu0 0
      %1342 = vmatpush1.bf16.msra.mxu0 0
      %1343 = vmatprep.subr.bf16.mxu0 0
      %1344 = vmatpush1.bf16.msra.mxu0 0
      %1345 = vmatprep.subr.bf16.mxu0 0
      %1346 = vmatpush1.bf16.msra.mxu0 0
      %1347 = vmatprep.subr.bf16.mxu0 0
      %1348 = vmatpush1.bf16.msra.mxu0 0
      %1349 = vmatprep.subr.bf16.mxu0 0
      %1350 = vmatpush1.bf16.msra.mxu0 0
      %1351 = vmatprep.subr.bf16.mxu0 0
      %1352 = vmatpush1.bf16.msra.mxu0 0
      %1353 = vmatprep.subr.bf16.mxu0 %v1337
      %1354 = vmatpush1.bf16.msra.mxu0 %v1334
      %1355 = vmatprep.subr.bf16.mxu0 0
      %1356 = vmatpush2.bf16.msra.mxu0 0
      %1357 = vmatprep.subr.bf16.mxu0 0
      %1358 = vmatpush2.bf16.msra.mxu0 0
      %1359 = vmatprep.subr.bf16.mxu0 0
      %1360 = vmatpush2.bf16.msra.mxu0 0
      %1361 = vmatprep.subr.bf16.mxu0 0
      %1362 = vmatpush2.bf16.msra.mxu0 0
      %1363 = vmatprep.subr.bf16.mxu0 0
      %1364 = vmatpush2.bf16.msra.mxu0 0
      %1365 = vmatprep.subr.bf16.mxu0 0
      %1366 = vmatpush2.bf16.msra.mxu0 0
      %1367 = vmatprep.subr.bf16.mxu0 0
      %1368 = vmatpush2.bf16.msra.mxu0 0
      %1369 = vmatprep.subr.bf16.mxu0 0
      %1370 = vmatpush2.bf16.msra.mxu0 0
      %1371 = vmatprep.mubr.bf16.mxu0 0
      %1372 = vmatmul.mubr.bf16.gmra.mxu0 %v1331
      %v1373 = vpop.f32.mrf.mxu0
      %v1374 = vadd.f32 0.0, %v1373
      %v1375 = vpop.f32.mrf.mxu0
      %v1376 = vadd.f32 0.0, %v1375
      %v1377 = vpop.f32.mrf.mxu0
      %v1378 = vpop.f32.mrf.mxu0
      %1379 = vdwg.mxu0
      %v1380 = vadd.f32 %v1306, %v1374
      %v1381 = vadd.f32 %v1307, %v1376
      %v1382 = vmul.f32 %v1308, %v731
      %v1383 = vmul.f32 %v1309, %v735
      %v1384 = vmul.f32 %v1310, %v733
      %s1385 = scalar_lea.vmem %s3, 24
      %v1386 = vld [vmem:[%s1385] sm:$0xf]
      %v1387 = vpack.c.bf16 %v1382, %v1382
      %v1388 = vpack.c.bf16 %v1383, %v1383
      %v1389 = vpack.c.bf16 %v1384, %v1384
      %1393 = vrot.lane.b32.xlu0 %v1387, 113
      %v1394 = vpop.permute.xlu0 %1393
      %1395 = vrot.lane.b32.xlu0 %v1388, 113
      %v1396 = vpop.permute.xlu0 %1395
      %1397 = vrot.lane.b32.xlu0 %v1389, 113
      %v1398 = vpop.permute.xlu0 %1397
      %v1399 = vsel %vm756, %v1394, %v1396
      %v1400 = vsel %vm756, %v1396, %v1398
      %v1402 = vsel %vm307, %v1386, 0
      %v1405 = vsel %vm311, %v1399, 0
      %v1408 = vsel %vm311, %v1400, 0
      %1410 = vmatprep.subr.bf16.mxu0 0
      %1411 = vmatpush1.bf16.msra.mxu0 0
      %1412 = vmatprep.subr.bf16.mxu0 0
      %1413 = vmatpush1.bf16.msra.mxu0 0
      %1414 = vmatprep.subr.bf16.mxu0 0
      %1415 = vmatpush1.bf16.msra.mxu0 0
      %1416 = vmatprep.subr.bf16.mxu0 0
      %1417 = vmatpush1.bf16.msra.mxu0 0
      %1418 = vmatprep.subr.bf16.mxu0 0
      %1419 = vmatpush1.bf16.msra.mxu0 0
      %1420 = vmatprep.subr.bf16.mxu0 0
      %1421 = vmatpush1.bf16.msra.mxu0 0
      %1422 = vmatprep.subr.bf16.mxu0 0
      %1423 = vmatpush1.bf16.msra.mxu0 0
      %1424 = vmatprep.subr.bf16.mxu0 %v1408
      %1425 = vmatpush1.bf16.msra.mxu0 %v1405
      %1426 = vmatprep.subr.bf16.mxu0 0
      %1427 = vmatpush2.bf16.msra.mxu0 0
      %1428 = vmatprep.subr.bf16.mxu0 0
      %1429 = vmatpush2.bf16.msra.mxu0 0
      %1430 = vmatprep.subr.bf16.mxu0 0
      %1431 = vmatpush2.bf16.msra.mxu0 0
      %1432 = vmatprep.subr.bf16.mxu0 0
      %1433 = vmatpush2.bf16.msra.mxu0 0
      %1434 = vmatprep.subr.bf16.mxu0 0
      %1435 = vmatpush2.bf16.msra.mxu0 0
      %1436 = vmatprep.subr.bf16.mxu0 0
      %1437 = vmatpush2.bf16.msra.mxu0 0
      %1438 = vmatprep.subr.bf16.mxu0 0
      %1439 = vmatpush2.bf16.msra.mxu0 0
      %1440 = vmatprep.subr.bf16.mxu0 0
      %1441 = vmatpush2.bf16.msra.mxu0 0
      %1442 = vmatprep.mubr.bf16.mxu0 0
      %1443 = vmatmul.mubr.bf16.gmra.mxu0 %v1402
      %v1444 = vpop.f32.mrf.mxu0
      %v1445 = vadd.f32 0.0, %v1444
      %v1446 = vpop.f32.mrf.mxu0
      %v1447 = vadd.f32 0.0, %v1446
      %v1448 = vpop.f32.mrf.mxu0
      %v1449 = vpop.f32.mrf.mxu0
      %1450 = vdwg.mxu0
      %v1451 = vadd.f32 %v1380, %v1445
      %v1452 = vadd.f32 %v1381, %v1447
      %s1453 = scalar_lea.vmem %s3, 28
      %v1454 = vld [vmem:[%s1453] sm:$0xf]
      %v1455 = vpack.c.bf16 %v1308, %v1308
      %v1456 = vpack.c.bf16 %v1309, %v1309
      %v1457 = vpack.c.bf16 %v1310, %v1310
      %1461 = vrot.lane.b32.xlu0 %v1455, 112
      %v1462 = vpop.permute.xlu0 %1461
      %1463 = vrot.lane.b32.xlu0 %v1456, 112
      %v1464 = vpop.permute.xlu0 %1463
      %1465 = vrot.lane.b32.xlu0 %v1457, 112
      %v1466 = vpop.permute.xlu0 %1465
      %v1467 = vsel %vm825, %v1462, %v1464
      %v1468 = vsel %vm825, %v1464, %v1466
      %v1470 = vsel %vm307, %v1454, 0
      %v1473 = vsel %vm311, %v1467, 0
      %v1476 = vsel %vm311, %v1468, 0
      %1478 = vmatprep.subr.bf16.mxu0 0
      %1479 = vmatpush1.bf16.msra.mxu0 0
      %1480 = vmatprep.subr.bf16.mxu0 0
      %1481 = vmatpush1.bf16.msra.mxu0 0
      %1482 = vmatprep.subr.bf16.mxu0 0
      %1483 = vmatpush1.bf16.msra.mxu0 0
      %1484 = vmatprep.subr.bf16.mxu0 0
      %1485 = vmatpush1.bf16.msra.mxu0 0
      %1486 = vmatprep.subr.bf16.mxu0 0
      %1487 = vmatpush1.bf16.msra.mxu0 0
      %1488 = vmatprep.subr.bf16.mxu0 0
      %1489 = vmatpush1.bf16.msra.mxu0 0
      %1490 = vmatprep.subr.bf16.mxu0 0
      %1491 = vmatpush1.bf16.msra.mxu0 0
      %1492 = vmatprep.subr.bf16.mxu0 %v1476
      %1493 = vmatpush1.bf16.msra.mxu0 %v1473
      %1494 = vmatprep.subr.bf16.mxu0 0
      %1495 = vmatpush2.bf16.msra.mxu0 0
      %1496 = vmatprep.subr.bf16.mxu0 0
      %1497 = vmatpush2.bf16.msra.mxu0 0
      %1498 = vmatprep.subr.bf16.mxu0 0
      %1499 = vmatpush2.bf16.msra.mxu0 0
      %1500 = vmatprep.subr.bf16.mxu0 0
      %1501 = vmatpush2.bf16.msra.mxu0 0
      %1502 = vmatprep.subr.bf16.mxu0 0
      %1503 = vmatpush2.bf16.msra.mxu0 0
      %1504 = vmatprep.subr.bf16.mxu0 0
      %1505 = vmatpush2.bf16.msra.mxu0 0
      %1506 = vmatprep.subr.bf16.mxu0 0
      %1507 = vmatpush2.bf16.msra.mxu0 0
      %1508 = vmatprep.subr.bf16.mxu0 0
      %1509 = vmatpush2.bf16.msra.mxu0 0
      %1510 = vmatprep.mubr.bf16.mxu0 0
      %1511 = vmatmul.mubr.bf16.gmra.mxu0 %v1470
      %v1512 = vpop.f32.mrf.mxu0
      %v1513 = vadd.f32 0.0, %v1512
      %v1514 = vpop.f32.mrf.mxu0
      %v1515 = vadd.f32 0.0, %v1514
      %v1516 = vpop.f32.mrf.mxu0
      %v1517 = vpop.f32.mrf.mxu0
      %1518 = vdwg.mxu0
      %v1519 = vadd.f32 %v1451, %v1513
      %v1520 = vadd.f32 %v1452, %v1515
      %v1521 = vmul.f32 %v1308, %v881
      %v1522 = vmul.f32 %v1309, %v885
      %v1523 = vmul.f32 %v1310, %v883
      %s1524 = scalar_lea.vmem %s3, 32
      %v1525 = vld [vmem:[%s1524] sm:$0xf]
      %v1526 = vpack.c.bf16 %v1521, %v1521
      %v1527 = vpack.c.bf16 %v1522, %v1522
      %v1528 = vpack.c.bf16 %v1523, %v1523
      %1532 = vrot.lane.b32.xlu0 %v1526, 111
      %v1533 = vpop.permute.xlu0 %1532
      %1534 = vrot.lane.b32.xlu0 %v1527, 111
      %v1535 = vpop.permute.xlu0 %1534
      %1536 = vrot.lane.b32.xlu0 %v1528, 111
      %v1537 = vpop.permute.xlu0 %1536
      %v1538 = vsel %vm906, %v1533, %v1535
      %v1539 = vsel %vm906, %v1535, %v1537
      %v1541 = vsel %vm307, %v1525, 0
      %v1544 = vsel %vm311, %v1538, 0
      %v1547 = vsel %vm311, %v1539, 0
      %1549 = vmatprep.subr.bf16.mxu0 0
      %1550 = vmatpush1.bf16.msra.mxu0 0
      %1551 = vmatprep.subr.bf16.mxu0 0
      %1552 = vmatpush1.bf16.msra.mxu0 0
      %1553 = vmatprep.subr.bf16.mxu0 0
      %1554 = vmatpush1.bf16.msra.mxu0 0
      %1555 = vmatprep.subr.bf16.mxu0 0
      %1556 = vmatpush1.bf16.msra.mxu0 0
      %1557 = vmatprep.subr.bf16.mxu0 0
      %1558 = vmatpush1.bf16.msra.mxu0 0
      %1559 = vmatprep.subr.bf16.mxu0 0
      %1560 = vmatpush1.bf16.msra.mxu0 0
      %1561 = vmatprep.subr.bf16.mxu0 0
      %1562 = vmatpush1.bf16.msra.mxu0 0
      %1563 = vmatprep.subr.bf16.mxu0 %v1547
      %1564 = vmatpush1.bf16.msra.mxu0 %v1544
      %1565 = vmatprep.subr.bf16.mxu0 0
      %1566 = vmatpush2.bf16.msra.mxu0 0
      %1567 = vmatprep.subr.bf16.mxu0 0
      %1568 = vmatpush2.bf16.msra.mxu0 0
      %1569 = vmatprep.subr.bf16.mxu0 0
      %1570 = vmatpush2.bf16.msra.mxu0 0
      %1571 = vmatprep.subr.bf16.mxu0 0
      %1572 = vmatpush2.bf16.msra.mxu0 0
      %1573 = vmatprep.subr.bf16.mxu0 0
      %1574 = vmatpush2.bf16.msra.mxu0 0
      %1575 = vmatprep.subr.bf16.mxu0 0
      %1576 = vmatpush2.bf16.msra.mxu0 0
      %1577 = vmatprep.subr.bf16.mxu0 0
      %1578 = vmatpush2.bf16.msra.mxu0 0
      %1579 = vmatprep.subr.bf16.mxu0 0
      %1580 = vmatpush2.bf16.msra.mxu0 0
      %1581 = vmatprep.mubr.bf16.mxu0 0
      %1582 = vmatmul.mubr.bf16.gmra.mxu0 %v1541
      %v1583 = vpop.f32.mrf.mxu0
      %v1584 = vadd.f32 0.0, %v1583
      %v1585 = vpop.f32.mrf.mxu0
      %v1586 = vadd.f32 0.0, %v1585
      %v1587 = vpop.f32.mrf.mxu0
      %v1588 = vpop.f32.mrf.mxu0
      %1589 = vdwg.mxu0
      %v1590 = vadd.f32 %v1519, %v1584
      %v1591 = vadd.f32 %v1520, %v1586
      %v1592 = vld [vmem:[%s4] sm:$0xff]
      %1594 = vset.pattern.permute.xlu0 0
      %1595 = vperm.xlu0 %1594, %v1592
      %v1596 = vpop.permute.xlu0 %1595
      %v1598 = vadd.f32 %v1590, %v1596
      %v1599 = vadd.f32 %v1591, %v1596
      %v1600 = vmul.f32 %v1598, 0.2
      %v1601 = vmul.f32 %v1599, 0.2
      %v1602 = vmax.f32 %v1598, %v1600
      %v1603 = vmax.f32 %v1599, %v1601
      %1604 = vst [vmem:[#allocation2 + $0x8] sm:$0xff] %v1602
      %1605 = vst [vmem:[#allocation2 + $0x10] sm:$0xff] %v1603
      %v1606 = vld [vmem:[#allocation2 + $0x8] sm:$0xff]
      %v1607 = vld [vmem:[#allocation2 + $0x10] sm:$0xff]
      %v1608 = vld [vmem:[#allocation2 + $0x18] sm:$0xff]
      %1612 = vrot.lane.b32.xlu0 %v1606, 127
      %v1613 = vpop.permute.xlu0 %1612
      %1614 = vrot.lane.b32.xlu0 %v1607, 127
      %v1615 = vpop.permute.xlu0 %1614
      %1616 = vrot.lane.b32.xlu0 %v1608, 127
      %v1617 = vpop.permute.xlu0 %1616
      %v1618 = vsel %vm515, %v1613, %v1615
      %v1619 = vsel %vm515, %v1615, %v1617
      %v1622 = vmax.f32 %v1602, %v1618
      %v1623 = vmax.f32 %v1603, %v1619
      %v1625 = vmax.f32 %v1606, %v1618
      %v1626 = vmax.f32 %v1607, %v1619
      %v1627 = vmax.f32 %v1608, %v1617
      %1631 = vrot.lane.b32.xlu0 %v1625, 112
      %v1632 = vpop.permute.xlu0 %1631
      %1633 = vrot.lane.b32.xlu0 %v1626, 112
      %v1634 = vpop.permute.xlu0 %1633
      %1635 = vrot.lane.b32.xlu0 %v1627, 112
      %v1636 = vpop.permute.xlu0 %1635
      %vm1637 = vcmask 916480
      %v1638 = vsel %vm1637, %v1632, %v1634
      %v1639 = vsel %vm1637, %v1634, %v1636
      %v1642 = vmax.f32 %v1622, %v1638
      %v1643 = vmax.f32 %v1623, %v1639
      %1644 = vst [vmem:[%s251] sm:$0xff] %v1642
      %1645 = vst [vmem:[%s251 + $0x8] sm:$0xff] %v1643
      %p1646 = scmp.lt.s32.totalorder %s17, 1
      %s1647 = scalar_select %p1646, %s17, 1
      %s1648 = smul.addr %s1647, 2
      %s1649 = smul.addr %s1648, 8
      %s1650 = scalar_lea.vmem %s6, %s1649
      // Predicated region
      $region45: #{double_conv_forward.1} parent=43 // pred_check
        %p1651 = pneg %p166
      $region46: #{double_conv_forward.1} parent=43 // pred_check_branch
        %1653 = sbr.rel (%p1651) target = $region48
      $region47: #{double_conv_forward.1} parent=43 // pred_region
        _
      $region48: #{double_conv_forward.1} parent=43 // pred_fallthru
        _
    $region44: #{double_conv_forward.1} parent=5 // pred_fallthru
      _
    %p1654 = scmp.le.s32.totalorder 2, %s12
    // Predicated region
    $region49: #{double_conv_forward.1} parent=5 // pred_check
      %p1655 = pneg %p1654
    $region50: #{double_conv_forward.1} parent=5 // pred_check_branch
      %1657 = sbr.rel (%p1655) target = $region52
    $region51: #{double_conv_forward.1} parent=5 // pred_region
      %s1658 = ssub.s32 %s12, 2
      // Predicated region
      $region53: #{double_conv_forward.1} parent=51 // pred_check
        %p1659 = pneg %p172
      $region54: #{double_conv_forward.1} parent=51 // pred_check_branch
        %1661 = sbr.rel (%p1659) target = $region56
      $region55: #{double_conv_forward.1} parent=51 // pred_region
        %p1662 = scmp.lt.s32.totalorder %s18, 1
        %s1663 = scalar_select %p1662, %s18, 1
        %s1664 = smul.addr %s1663, 2
        %s1665 = smul.addr %s1664, 8
        %s1666 = scalar_lea.vmem %s6, %s1665
      $region56: #{double_conv_forward.1} parent=51 // pred_fallthru
        _
    $region52: #{double_conv_forward.1} parent=5 // pred_fallthru
      _
  $region6: #{double_conv_forward.1} parent=0 // loop_footer
    %s16 = sadd.s32 1, %s12
  $region7: #{double_conv_forward.1} parent=0 // loop_footer_branch
    %11 = sbr.rel target = $region3
  $region8: #{double_conv_forward.1} parent=0 // loop_exit
    _

</llo_original>
